<compile_context>
chip_gen: v7x
topology: tpu7x:2x2x1
jax: 0.10.0
libtpu: 0.0.40
codegen_flags: <defaults>
</compile_context>

<pallas_src>
import jax
import jax.numpy as jnp
from jax.experimental import pallas as pl
from jax.experimental.pallas import tpu as pltpu


_TARGET_DIMS = [663, 350, 256, 128]
_HERB_DIMS = [19858, 2048, 1024, 128]


def _round_up(v, m):
    return ((v + m - 1) // m) * m


def _tpu_config():
    """(weight-panel width tn, vmem limit), conservative if HW query fails."""
    tn, vmem_limit = 128, 40 * 1024 * 1024            # fits v7x's 64 MiB/core VMEM
    try:
        cap = getattr(pltpu.get_tpu_info(), "vmem_capacity_bytes", None)
        if cap is not None and cap >= 120 * 1024 * 1024:   # v5e / v6e: 128 MiB
            tn, vmem_limit = 256, 80 * 1024 * 1024
    except Exception:
        pass
    return tn, vmem_limit


_TN, _VMEM_LIMIT = _tpu_config()


# --------------------------------------------------------------------------
# Streaming linear for the huge herb layer 1 (19858 -> 2048, ~81 MB bf16 weight).
# Full-K activation block is VMEM-resident; the weight is streamed as contiguous
# pre-tiled (Kp, tn) panels over a single "parallel" N grid axis.
# --------------------------------------------------------------------------
def _streaming_l1_kernel(x_ref, w_ref, b_ref, o_ref):
    # bf16 x bf16 MXU matmul with f32 accumulation; bias-add + relu fused.
    x = x_ref[...].astype(w_ref.dtype)
    out = jnp.dot(x, w_ref[0], preferred_element_type=jnp.float32)
    out = jnp.maximum(out + b_ref[...], 0.0)
    o_ref[...] = out.astype(o_ref.dtype)


def streaming_linear_pretiled(x_p, w_tiled, b_p):
    """y = relu(x @ W + b) with W pre-tiled as (P, Kp, tn) contiguous panels."""
    Mp, Kp = x_p.shape
    P, Kw, tn = w_tiled.shape
    Np = P * tn
    assert Kp == Kw and Mp % 8 == 0 and b_p.shape == (1, Np)

    cost = pl.CostEstimate(
        flops=2 * Mp * Kp * Np,
        transcendentals=0,
        bytes_accessed=(w_tiled.size * w_tiled.dtype.itemsize
                        + x_p.size * x_p.dtype.itemsize
                        + b_p.size * b_p.dtype.itemsize
                        + Mp * Np * 4),
    )

    return pl.pallas_call(
        _streaming_l1_kernel,
        out_shape=jax.ShapeDtypeStruct((Mp, Np), jnp.float32),
        grid_spec=pltpu.PrefetchScalarGridSpec(
            num_scalar_prefetch=0,
            grid=(P,),
            in_specs=[
                # Activation block: constant index -> DMA'd once, stays resident.
                pl.BlockSpec((Mp, Kp), lambda j: (0, 0)),
                # Weight panel: one contiguous (Kp, tn) HBM slab per grid step.
                pl.BlockSpec((1, Kp, tn), lambda j: (j, 0, 0)),
                pl.BlockSpec((1, tn), lambda j: (0, j)),
            ],
            out_specs=pl.BlockSpec((Mp, tn), lambda j: (0, j)),
        ),
        compiler_params=pltpu.CompilerParams(
            dimension_semantics=("parallel",),      # shards panels over v7x's 2 TCs
            vmem_limit_bytes=_VMEM_LIMIT,
        ),
        cost_estimate=cost,
    )(x_p, w_tiled, b_p)


# --------------------------------------------------------------------------
# Fused MLP: an entire small chain (all weights fit in VMEM) in one pallas_call.
# Used for the full target branch (f32) and the herb tail (bf16 weights).
# --------------------------------------------------------------------------
def _fused_mlp_kernel(*refs):
    x_ref = refs[0]
    o_ref = refs[-1]
    wb = refs[1:-1]
    n_layers = len(wb) // 2

    h = x_ref[...]
    for li in range(n_layers):
        w_ref, b_ref = wb[2 * li], wb[2 * li + 1]
        h = jnp.dot(h.astype(w_ref.dtype), w_ref[...],
                    preferred_element_type=jnp.float32) + b_ref[...]
        if li < n_layers - 1:
            h = jnp.maximum(h, 0.0)
    o_ref[...] = h.astype(o_ref.dtype)


def fused_mlp(x_p, layers):
    """layers: list of (w_padded, b_padded); whole chain runs in one grid step."""
    Mp = x_p.shape[0]
    Nout = layers[-1][0].shape[1]

    args = [x_p]
    in_specs = [pl.BlockSpec(x_p.shape, lambda i: (0, 0))]
    for w, b in layers:
        args += [w, b]
        in_specs += [
            pl.BlockSpec(w.shape, lambda i: (0, 0)),
            pl.BlockSpec(b.shape, lambda i: (0, 0)),
        ]

    return pl.pallas_call(
        _fused_mlp_kernel,
        out_shape=jax.ShapeDtypeStruct((Mp, Nout), jnp.float32),
        grid_spec=pltpu.PrefetchScalarGridSpec(
            num_scalar_prefetch=0,
            grid=(1,),
            in_specs=in_specs,
            out_specs=pl.BlockSpec((Mp, Nout), lambda i: (0, 0)),
        ),
        compiler_params=pltpu.CompilerParams(
            dimension_semantics=("arbitrary",),
            vmem_limit_bytes=_VMEM_LIMIT,
        ),
    )(*args)


# --------------------------------------------------------------------------
# Parameters: initialized at true shapes, zero-padded / pre-tiled / down-cast ONCE
# so the hot path never re-pads or re-casts weights.
# --------------------------------------------------------------------------
def _init_linear(key, fan_in, fan_out, dtype=jnp.float32):
    kw, kb = jax.random.split(key)
    bound = 1.0 / jnp.sqrt(jnp.asarray(fan_in, dtype))
    w = jax.random.uniform(kw, (fan_in, fan_out), dtype, -bound, bound)
    b = jax.random.uniform(kb, (fan_out,), dtype, -bound, bound)
    return w, b


def make_params(seed=0):
    key = jax.random.PRNGKey(seed)
    keys = jax.random.split(key, 6)
    params = {"target": [], "herb": []}
    for name, dims, ks, wdtype in (("target", _TARGET_DIMS, keys[:3], jnp.float32),
                                   ("herb", _HERB_DIMS, keys[3:], jnp.bfloat16)):
        for li in range(3):
            fan_in, fan_out = dims[li], dims[li + 1]
            w, b = _init_linear(ks[li], fan_in, fan_out)
            kp, np_ = _round_up(fan_in, 128), _round_up(fan_out, 128)
            w_p = jnp.zeros((kp, np_), jnp.float32).at[:fan_in, :fan_out].set(w)
            w_p = w_p.astype(wdtype)
            b_p = jnp.zeros((1, np_), jnp.float32).at[0, :fan_out].set(b)
            layer = {"b": b_p, "k": fan_in, "n": fan_out}
            if name == "herb" and li == 0:
                # Pre-tile the ~81 MB bf16 L1 weight into contiguous (P, Kp, tn) panels.
                layer["w_tiled"] = w_p.reshape(kp, np_ // _TN, _TN).transpose(1, 0, 2)
            else:
                layer["w"] = w_p
            params[name].append(layer)
    return params


# --------------------------------------------------------------------------
# Forward pass (DynamicLinearLayer.forward semantics).
# --------------------------------------------------------------------------
def dynamic_linear_forward(params, x):
    if x.ndim == 1:
        x = x[None, :]
    M, K = x.shape
    if K == 663:
        layers = params["target"]
    elif K == 19858:
        layers = params["herb"]
    else:
        raise ValueError("Unsupported input dimension")

    Mp = _round_up(M, 8)

    if K == 663:
        assert Mp <= 512, "add an M grid axis for larger batches"
        Kp = layers[0]["w"].shape[0]
        x_p = jnp.zeros((Mp, Kp), jnp.float32).at[:M, :K].set(x)
        # Whole target branch (<1 MB of f32 weights) fused into one kernel.
        out_p = fused_mlp(x_p, [(l["w"], l["b"]) for l in layers])
    else:
        # Resident activation block is Mp*19968*4 B; keep it well inside VMEM.
        assert Mp <= 128, "add an M grid axis for larger herb batches"
        Kp = layers[0]["w_tiled"].shape[1]
        x_p = jnp.zeros((Mp, Kp), jnp.float32).at[:M, :K].set(x)
        # Herb: stream the ~81 MB bf16 L1 weight (relu fused), then run the small
        # bf16 tail (2048->1024->128, ~4.5 MB) fused in one kernel.
        h1_p = streaming_linear_pretiled(x_p, layers[0]["w_tiled"], layers[0]["b"])
        out_p = fused_mlp(h1_p, [(l["w"], l["b"]) for l in layers[1:]])

    out = out_p[:M, :layers[-1]["n"]]
    # torch .squeeze(0): drop leading dim only if it is size 1
    if out.shape[0] == 1:
        out = out[0]
    return out


# --------------------------------------------------------------------------
# Pure-JAX reference (same stored params: bf16 weights upcast to f32, un-tiled).
# --------------------------------------------------------------------------
def _reference(params, x):
    if x.ndim == 1:
        x = x[None, :]
    layers = params["target"] if x.shape[1] == 663 else params["herb"]
    h = x.astype(jnp.float32)
    for li, l in enumerate(layers):
        if "w_tiled" in l:
            P, kp, tn = l["w_tiled"].shape
            w_full = l["w_tiled"].transpose(1, 0, 2).reshape(kp, P * tn)
        else:
            w_full = l["w"]
        w = w_full[: l["k"], : l["n"]].astype(jnp.float32)
        b = l["b"][0, : l["n"]].astype(jnp.float32)
        h = h @ w + b
        if li < len(layers) - 1:
            h = jnp.maximum(h, 0.0)
    if h.shape[0] == 1:
        h = h[0]
    return h


if __name__ == "__main__":
    params = make_params(seed=0)
    key = jax.random.PRNGKey(0)
    k1, k2, k3 = jax.random.split(key, 3)

    # batch=2 for both branches, plus a 1-D input to exercise the unsqueeze path
    x_target = jax.random.normal(k1, (2, 663), jnp.float32)
    x_herb = jax.random.normal(k2, (2, 19858), jnp.float32)
    x_1d = jax.random.normal(k3, (663,), jnp.float32)

    out_t = jax.block_until_ready(dynamic_linear_forward(params, x_target))
    out_h = jax.block_until_ready(dynamic_linear_forward(params, x_herb))
    out_1 = jax.block_until_ready(dynamic_linear_forward(params, x_1d))

    assert out_t.shape == (2, 128)
    assert out_h.shape == (2, 128)
    assert out_1.shape == (128,)

    ref_t = _reference(params, x_target)
    ref_h = _reference(params, x_herb)
    ref_1 = _reference(params, x_1d)

    assert jnp.allclose(out_t, ref_t, atol=1e-4, rtol=1e-4)
    # herb branch streams bf16 weights / casts activations to bf16 -> relaxed tol
    assert jnp.allclose(out_h, ref_h, atol=3e-2, rtol=3e-2)
    assert jnp.allclose(out_1, ref_1, atol=1e-4, rtol=1e-4)

    print("KERNEL_OK")
</pallas_src>

<mosaic_0001>
module attributes {stable_mosaic.version = 11 : i64} {
  func.func @_fused_mlp_kernel(%arg0: i32, %arg1: memref<8x768xf32, #tpu.memory_space<vmem>>, %arg2: memref<768x384xf32, #tpu.memory_space<vmem>>, %arg3: memref<1x384xf32, #tpu.memory_space<vmem>>, %arg4: memref<384x256xf32, #tpu.memory_space<vmem>>, %arg5: memref<1x256xf32, #tpu.memory_space<vmem>>, %arg6: memref<256x128xf32, #tpu.memory_space<vmem>>, %arg7: memref<1x128xf32, #tpu.memory_space<vmem>>, %arg8: memref<8x128xf32, #tpu.memory_space<vmem>>) attributes {dimension_semantics = [#tpu.dimension_semantics<arbitrary>], iteration_bounds = array<i64: 1>, scalar_prefetch = 0 : i64, scratch_operands = 0 : i64, tpu.core_type = #tpu.core_type<tc>, window_params = [{pipeline_mode = #tpu.pipeline_mode<synchronous>, transform_indices = @transform_0, window_bounds = array<i64: 8, 768>}, {pipeline_mode = #tpu.pipeline_mode<synchronous>, transform_indices = @transform_1, window_bounds = array<i64: 768, 384>}, {pipeline_mode = #tpu.pipeline_mode<synchronous>, transform_indices = @transform_2, window_bounds = array<i64: 1, 384>}, {pipeline_mode = #tpu.pipeline_mode<synchronous>, transform_indices = @transform_3, window_bounds = array<i64: 384, 256>}, {pipeline_mode = #tpu.pipeline_mode<synchronous>, transform_indices = @transform_4, window_bounds = array<i64: 1, 256>}, {pipeline_mode = #tpu.pipeline_mode<synchronous>, transform_indices = @transform_5, window_bounds = array<i64: 256, 128>}, {pipeline_mode = #tpu.pipeline_mode<synchronous>, transform_indices = @transform_6, window_bounds = array<i64: 1, 128>}, {pipeline_mode = #tpu.pipeline_mode<synchronous>, transform_indices = @transform_7, window_bounds = array<i64: 8, 128>}]} {
    %c0 = arith.constant 0 : index
    %c0_0 = arith.constant 0 : index
    %0 = vector.load %arg1[%c0, %c0_0] : memref<8x768xf32, #tpu.memory_space<vmem>>, vector<8x768xf32>
    %c0_1 = arith.constant 0 : index
    %c0_2 = arith.constant 0 : index
    %1 = vector.load %arg2[%c0_1, %c0_2] : memref<768x384xf32, #tpu.memory_space<vmem>>, vector<768x384xf32>
    %cst = arith.constant dense<0.000000e+00> : vector<8x384xf32>
    %2 = tpu.matmul %0, %1, %cst {dimension_numbers = #tpu.dot_dimension_numbers<[1], [0], [0], [1], [0, 0, 1, 1], [], []>} : vector<8x768xf32>, vector<768x384xf32>, vector<8x384xf32> -> vector<8x384xf32>
    %c0_3 = arith.constant 0 : index
    %c0_4 = arith.constant 0 : index
    %3 = vector.load %arg3[%c0_3, %c0_4] : memref<1x384xf32, #tpu.memory_space<vmem>>, vector<1x384xf32>
    %4 = vector.broadcast %3 : vector<1x384xf32> to vector<8x384xf32>
    %5 = arith.addf %2, %4 : vector<8x384xf32>
    %cst_5 = arith.constant 0.000000e+00 : f32
    %6 = vector.broadcast %cst_5 : f32 to vector<8x384xf32>
    %7 = arith.maximumf %5, %6 : vector<8x384xf32>
    %c0_6 = arith.constant 0 : index
    %c0_7 = arith.constant 0 : index
    %8 = vector.load %arg4[%c0_6, %c0_7] : memref<384x256xf32, #tpu.memory_space<vmem>>, vector<384x256xf32>
    %cst_8 = arith.constant dense<0.000000e+00> : vector<8x256xf32>
    %9 = tpu.matmul %7, %8, %cst_8 {dimension_numbers = #tpu.dot_dimension_numbers<[1], [0], [0], [1], [0, 0, 1, 1], [], []>} : vector<8x384xf32>, vector<384x256xf32>, vector<8x256xf32> -> vector<8x256xf32>
    %c0_9 = arith.constant 0 : index
    %c0_10 = arith.constant 0 : index
    %10 = vector.load %arg5[%c0_9, %c0_10] : memref<1x256xf32, #tpu.memory_space<vmem>>, vector<1x256xf32>
    %11 = vector.broadcast %10 : vector<1x256xf32> to vector<8x256xf32>
    %12 = arith.addf %9, %11 : vector<8x256xf32>
    %cst_11 = arith.constant 0.000000e+00 : f32
    %13 = vector.broadcast %cst_11 : f32 to vector<8x256xf32>
    %14 = arith.maximumf %12, %13 : vector<8x256xf32>
    %c0_12 = arith.constant 0 : index
    %c0_13 = arith.constant 0 : index
    %15 = vector.load %arg6[%c0_12, %c0_13] : memref<256x128xf32, #tpu.memory_space<vmem>>, vector<256x128xf32>
    %cst_14 = arith.constant dense<0.000000e+00> : vector<8x128xf32>
    %16 = tpu.matmul %14, %15, %cst_14 {dimension_numbers = #tpu.dot_dimension_numbers<[1], [0], [0], [1], [0, 0, 1, 1], [], []>} : vector<8x256xf32>, vector<256x128xf32>, vector<8x128xf32> -> vector<8x128xf32>
    %c0_15 = arith.constant 0 : index
    %c0_16 = arith.constant 0 : index
    %17 = vector.load %arg7[%c0_15, %c0_16] : memref<1x128xf32, #tpu.memory_space<vmem>>, vector<1x128xf32>
    %18 = vector.broadcast %17 : vector<1x128xf32> to vector<8x128xf32>
    %19 = arith.addf %16, %18 : vector<8x128xf32>
    %c0_17 = arith.constant 0 : index
    %c0_18 = arith.constant 0 : index
    %20 = vector.load %arg8[%c0_17, %c0_18] : memref<8x128xf32, #tpu.memory_space<vmem>>, vector<8x128xf32>
    tpu.vector_store %arg8[%c0_17, %c0_18], %19 {strides = array<i32>} : memref<8x128xf32, #tpu.memory_space<vmem>>, vector<8x128xf32>,
    return
  }
  func.func @transform_0(%arg0: i32) -> (i32, i32) {
    %c0_i32 = arith.constant 0 : i32
    %c0_i32_0 = arith.constant 0 : i32
    %c0_i32_1 = arith.constant 0 : i32
    return %c0_i32, %c0_i32_0 : i32, i32
  }
  func.func @transform_1(%arg0: i32) -> (i32, i32) {
    %c0_i32 = arith.constant 0 : i32
    %c0_i32_0 = arith.constant 0 : i32
    %c0_i32_1 = arith.constant 0 : i32
    return %c0_i32, %c0_i32_0 : i32, i32
  }
  func.func @transform_2(%arg0: i32) -> (i32, i32) {
    %c0_i32 = arith.constant 0 : i32
    %c0_i32_0 = arith.constant 0 : i32
    %c0_i32_1 = arith.constant 0 : i32
    return %c0_i32, %c0_i32_0 : i32, i32
  }
  func.func @transform_3(%arg0: i32) -> (i32, i32) {
    %c0_i32 = arith.constant 0 : i32
    %c0_i32_0 = arith.constant 0 : i32
    %c0_i32_1 = arith.constant 0 : i32
    return %c0_i32, %c0_i32_0 : i32, i32
  }
  func.func @transform_4(%arg0: i32) -> (i32, i32) {
    %c0_i32 = arith.constant 0 : i32
    %c0_i32_0 = arith.constant 0 : i32
    %c0_i32_1 = arith.constant 0 : i32
    return %c0_i32, %c0_i32_0 : i32, i32
  }
  func.func @transform_5(%arg0: i32) -> (i32, i32) {
    %c0_i32 = arith.constant 0 : i32
    %c0_i32_0 = arith.constant 0 : i32
    %c0_i32_1 = arith.constant 0 : i32
    return %c0_i32, %c0_i32_0 : i32, i32
  }
  func.func @transform_6(%arg0: i32) -> (i32, i32) {
    %c0_i32 = arith.constant 0 : i32
    %c0_i32_0 = arith.constant 0 : i32
    %c0_i32_1 = arith.constant 0 : i32
    return %c0_i32, %c0_i32_0 : i32, i32
  }
  func.func @transform_7(%arg0: i32) -> (i32, i32) {
    %c0_i32 = arith.constant 0 : i32
    %c0_i32_0 = arith.constant 0 : i32
    %c0_i32_1 = arith.constant 0 : i32
    return %c0_i32, %c0_i32_0 : i32, i32
  }
}

</mosaic_0001>

<llo_original>
// kernel: tpu_custom_call.1
$region0: #{tpu_custom_call.1}
  #allocation0 [shape = 'u32[]', space=smem, size = 0x4, offset = 0x4, fixed_abs, tag = 'smem constant byte address 0x4 - core index']
  #allocation1 [shape = 'u32[144,128]{1,0:T(1,128)}', space=vmem, size = 0x12000, scoped, tag = 'internal scratch']
  %s0 = inlined_call_operand.hbm [shape: f32[8,768], index: 0, kind: input, shape index: {}]
  %s1 = inlined_call_operand.hbm [shape: f32[768,384], index: 1, kind: input, shape index: {}]
  %s2 = inlined_call_operand.hbm [shape: f32[1,384], index: 2, kind: input, shape index: {}]
  %s3 = inlined_call_operand.hbm [shape: f32[384,256], index: 3, kind: input, shape index: {}]
  %s4 = inlined_call_operand.hbm [shape: f32[1,256], index: 4, kind: input, shape index: {}]
  %s5 = inlined_call_operand.hbm [shape: f32[256,128], index: 5, kind: input, shape index: {}]
  %s6 = inlined_call_operand.hbm [shape: f32[1,128], index: 6, kind: input, shape index: {}]
  %s7 = inlined_call_operand.hbm [shape: f32[8,128], index: 7, kind: output, shape index: {}]
  %s8 = sld [smem:[#allocation0]]
  $region66: #{tpu_custom_call.1} parent=0
    _
  %s10 = ssub.s32 1, %s8
  %s11 = scalar_select 0, %s10, %s8
  $region1: #{tpu_custom_call.1} parent=0
    #allocation2 [shape = 'u8[24576]{0}', space=vmem, size = 0x6000, scoped, tag = 'input window, operand 0, single buffered']
    #allocation3 [shape = 's32[1]{0}', space=sflag, size = 0x4, scoped, tag = 'scoped memory for tpu_custom_call.1']
    #allocation4 [shape = 's32[1]{0}', space=sflag, size = 0x4, scoped, tag = 'scoped memory for tpu_custom_call.1']
    #allocation5 [shape = 'u8[1179648]{0}', space=vmem, size = 0x120000, scoped, tag = 'input window, operand 1, single buffered']
    #allocation6 [shape = 's32[1]{0}', space=sflag, size = 0x4, scoped, tag = 'scoped memory for tpu_custom_call.1']
    #allocation7 [shape = 'u8[1536]{0}', space=vmem, size = 0x800, scoped, tag = 'input window, operand 2, single buffered']
    #allocation8 [shape = 'u8[393216]{0}', space=vmem, size = 0x60000, scoped, tag = 'input window, operand 3, single buffered']
    #allocation9 [shape = 's32[1]{0}', space=sflag, size = 0x4, scoped, tag = 'scoped memory for tpu_custom_call.1']
    #allocation10 [shape = 'u8[1024]{0}', space=vmem, size = 0x400, scoped, tag = 'input window, operand 4, single buffered']
    #allocation11 [shape = 'u8[131072]{0}', space=vmem, size = 0x20000, scoped, tag = 'input window, operand 5, single buffered']
    #allocation12 [shape = 's32[1]{0}', space=sflag, size = 0x4, scoped, tag = 'scoped memory for tpu_custom_call.1']
    #allocation13 [shape = 'u8[512]{0}', space=vmem, size = 0x400, scoped, tag = 'input window, operand 6, single buffered']
    #allocation14 [shape = 'u8[4096]{0}', space=vmem, size = 0x1000, scoped, tag = 'output window, operand 0, single buffered']
    %12 = vsyncpa [#allocation3], 0
    %13 = vsyncpa [#allocation6], 0
    %14 = vsyncpa [#allocation9], 0
    %15 = vsyncpa [#allocation12], 0
    %16 = vsyncpa [#allocation4], 0
    // Predicated region
    $region2: #{tpu_custom_call.1} parent=1 // pred_check
      _
    $region3: #{tpu_custom_call.1} parent=1 // pred_check_branch
      %18 = sbr.rel (0) target = $region5
    $region4: #{tpu_custom_call.1} parent=1 // pred_region
      %s20 = ssub.s32 768, 768
      %21 = vsyncadd [#allocation3], %s20
      %s23 = sshll.u32 [#allocation2], 4
      %s24 = int_to_ptr.vmem [resolvable:$true] %s23
      %26 = dma.hbm_to_vmem [thread:$0]  %s0, 768, %s24, [#allocation3]
    $region5: #{tpu_custom_call.1} parent=1 // pred_fallthru
      _
    // Predicated region
    $region6: #{tpu_custom_call.1} parent=1 // pred_check
      _
    $region7: #{tpu_custom_call.1} parent=1 // pred_check_branch
      %28 = sbr.rel (0) target = $region9
    $region8: #{tpu_custom_call.1} parent=1 // pred_region
      %s30 = ssub.s32 36864, 36864
      %31 = vsyncadd [#allocation6], %s30
      %s32 = sshll.u32 [#allocation5], 4
      %s33 = int_to_ptr.vmem [resolvable:$true] %s32
      %38 = dma.hbm_to_vmem [thread:$0]  %s1, 36864, %s33, [#allocation6], 384, 384, 24
    $region9: #{tpu_custom_call.1} parent=1 // pred_fallthru
      _
    // Predicated region
    $region10: #{tpu_custom_call.1} parent=1 // pred_check
      _
    $region11: #{tpu_custom_call.1} parent=1 // pred_check_branch
      %40 = sbr.rel (0) target = $region13
    $region12: #{tpu_custom_call.1} parent=1 // pred_region
      %s42 = ssub.s32 48, 48
      %43 = vsyncadd [#allocation6], %s42
      %s45 = sshll.u32 [#allocation7], 4
      %s46 = int_to_ptr.vmem [resolvable:$true] %s45
      %48 = dma.hbm_to_vmem [thread:$0]  %s2, 48, %s46, [#allocation6]
    $region13: #{tpu_custom_call.1} parent=1 // pred_fallthru
      _
    // Predicated region
    $region14: #{tpu_custom_call.1} parent=1 // pred_check
      _
    $region15: #{tpu_custom_call.1} parent=1 // pred_check_branch
      %50 = sbr.rel (0) target = $region17
    $region16: #{tpu_custom_call.1} parent=1 // pred_region
      %s52 = ssub.s32 12288, 12288
      %53 = vsyncadd [#allocation9], %s52
      %s54 = sshll.u32 [#allocation8], 4
      %s55 = int_to_ptr.vmem [resolvable:$true] %s54
      %60 = dma.hbm_to_vmem [thread:$0]  %s3, 12288, %s55, [#allocation9], 256, 256, 16
    $region17: #{tpu_custom_call.1} parent=1 // pred_fallthru
      _
    // Predicated region
    $region18: #{tpu_custom_call.1} parent=1 // pred_check
      _
    $region19: #{tpu_custom_call.1} parent=1 // pred_check_branch
      %62 = sbr.rel (0) target = $region21
    $region20: #{tpu_custom_call.1} parent=1 // pred_region
      %s64 = ssub.s32 32, 32
      %65 = vsyncadd [#allocation9], %s64
      %s67 = sshll.u32 [#allocation10], 4
      %s68 = int_to_ptr.vmem [resolvable:$true] %s67
      %70 = dma.hbm_to_vmem [thread:$0]  %s4, 32, %s68, [#allocation9]
    $region21: #{tpu_custom_call.1} parent=1 // pred_fallthru
      _
    // Predicated region
    $region22: #{tpu_custom_call.1} parent=1 // pred_check
      _
    $region23: #{tpu_custom_call.1} parent=1 // pred_check_branch
      %72 = sbr.rel (0) target = $region25
    $region24: #{tpu_custom_call.1} parent=1 // pred_region
      %s74 = ssub.s32 4096, 4096
      %75 = vsyncadd [#allocation12], %s74
      %s76 = sshll.u32 [#allocation11], 4
      %s77 = int_to_ptr.vmem [resolvable:$true] %s76
      %82 = dma.hbm_to_vmem [thread:$0]  %s5, 4096, %s77, [#allocation12], 128, 128, 8
    $region25: #{tpu_custom_call.1} parent=1 // pred_fallthru
      _
    // Predicated region
    $region26: #{tpu_custom_call.1} parent=1 // pred_check
      _
    $region27: #{tpu_custom_call.1} parent=1 // pred_check_branch
      %84 = sbr.rel (0) target = $region29
    $region28: #{tpu_custom_call.1} parent=1 // pred_region
      %s86 = ssub.s32 16, 16
      %87 = vsyncadd [#allocation12], %s86
      %s89 = sshll.u32 [#allocation13], 4
      %s90 = int_to_ptr.vmem [resolvable:$true] %s89
      %92 = dma.hbm_to_vmem [thread:$0]  %s6, 16, %s90, [#allocation12]
    $region29: #{tpu_custom_call.1} parent=1 // pred_fallthru
      _
    // Predicated region
    $region30: #{tpu_custom_call.1} parent=1 // pred_check
      _
    $region31: #{tpu_custom_call.1} parent=1 // pred_check_branch
      %94 = sbr.rel (0) target = $region33
    $region32: #{tpu_custom_call.1} parent=1 // pred_region
      %95 = dma.done [#allocation3], 768
    $region33: #{tpu_custom_call.1} parent=1 // pred_fallthru
      _
    // Predicated region
    $region34: #{tpu_custom_call.1} parent=1 // pred_check
      _
    $region35: #{tpu_custom_call.1} parent=1 // pred_check_branch
      %97 = sbr.rel (0) target = $region37
    $region36: #{tpu_custom_call.1} parent=1 // pred_region
      %98 = dma.done [#allocation6], 36864
    $region37: #{tpu_custom_call.1} parent=1 // pred_fallthru
      _
    // Predicated region
    $region38: #{tpu_custom_call.1} parent=1 // pred_check
      _
    $region39: #{tpu_custom_call.1} parent=1 // pred_check_branch
      %100 = sbr.rel (0) target = $region41
    $region40: #{tpu_custom_call.1} parent=1 // pred_region
      %101 = dma.done [#allocation6], 48
    $region41: #{tpu_custom_call.1} parent=1 // pred_fallthru
      _
    // Predicated region
    $region42: #{tpu_custom_call.1} parent=1 // pred_check
      _
    $region43: #{tpu_custom_call.1} parent=1 // pred_check_branch
      %103 = sbr.rel (0) target = $region45
    $region44: #{tpu_custom_call.1} parent=1 // pred_region
      %104 = dma.done [#allocation9], 12288
    $region45: #{tpu_custom_call.1} parent=1 // pred_fallthru
      _
    // Predicated region
    $region46: #{tpu_custom_call.1} parent=1 // pred_check
      _
    $region47: #{tpu_custom_call.1} parent=1 // pred_check_branch
      %106 = sbr.rel (0) target = $region49
    $region48: #{tpu_custom_call.1} parent=1 // pred_region
      %107 = dma.done [#allocation9], 32
    $region49: #{tpu_custom_call.1} parent=1 // pred_fallthru
      _
    // Predicated region
    $region50: #{tpu_custom_call.1} parent=1 // pred_check
      _
    $region51: #{tpu_custom_call.1} parent=1 // pred_check_branch
      %109 = sbr.rel (0) target = $region53
    $region52: #{tpu_custom_call.1} parent=1 // pred_region
      %110 = dma.done [#allocation12], 4096
    $region53: #{tpu_custom_call.1} parent=1 // pred_fallthru
      _
    // Predicated region
    $region54: #{tpu_custom_call.1} parent=1 // pred_check
      _
    $region55: #{tpu_custom_call.1} parent=1 // pred_check_branch
      %112 = sbr.rel (0) target = $region57
    $region56: #{tpu_custom_call.1} parent=1 // pred_region
      %113 = dma.done [#allocation12], 16
    $region57: #{tpu_custom_call.1} parent=1 // pred_fallthru
      _
    %v114 = vld [vmem:[#allocation2] sm:$0xff]
    %v115 = vld [vmem:[#allocation2 + $0x8] sm:$0xff]
    %v116 = vld [vmem:[#allocation2 + $0x10] sm:$0xff]
    %v117 = vld [vmem:[#allocation2 + $0x18] sm:$0xff]
    %v118 = vld [vmem:[#allocation2 + $0x20] sm:$0xff]
    %v119 = vld [vmem:[#allocation2 + $0x28] sm:$0xff]
    %v120 = vld [vmem:[#allocation5] sm:$0xff]
    %v121 = vld [vmem:[#allocation5 + $0x8] sm:$0xff]
    %v122 = vld [vmem:[#allocation5 + $0x10] sm:$0xff]
    %v123 = vld [vmem:[#allocation5 + $0x18] sm:$0xff]
    %v124 = vld [vmem:[#allocation5 + $0x20] sm:$0xff]
    %v125 = vld [vmem:[#allocation5 + $0x28] sm:$0xff]
    %v126 = vld [vmem:[#allocation5 + $0x30] sm:$0xff]
    %v127 = vld [vmem:[#allocation5 + $0x38] sm:$0xff]
    %v128 = vld [vmem:[#allocation5 + $0x40] sm:$0xff]
    %v129 = vld [vmem:[#allocation5 + $0x48] sm:$0xff]
    %v130 = vld [vmem:[#allocation5 + $0x50] sm:$0xff]
    %v131 = vld [vmem:[#allocation5 + $0x58] sm:$0xff]
    %v132 = vld [vmem:[#allocation5 + $0x60] sm:$0xff]
    %v133 = vld [vmem:[#allocation5 + $0x68] sm:$0xff]
    %v134 = vld [vmem:[#allocation5 + $0x70] sm:$0xff]
    %v135 = vld [vmem:[#allocation5 + $0x78] sm:$0xff]
    %v136 = vld [vmem:[#allocation5 + $0x80] sm:$0xff]
    %v137 = vld [vmem:[#allocation5 + $0x88] sm:$0xff]
    %v138 = vld [vmem:[#allocation5 + $0x90] sm:$0xff]
    %v139 = vld [vmem:[#allocation5 + $0x98] sm:$0xff]
    %v140 = vld [vmem:[#allocation5 + $0xa0] sm:$0xff]
    %v141 = vld [vmem:[#allocation5 + $0xa8] sm:$0xff]
    %v142 = vld [vmem:[#allocation5 + $0xb0] sm:$0xff]
    %v143 = vld [vmem:[#allocation5 + $0xb8] sm:$0xff]
    %v144 = vld [vmem:[#allocation5 + $0xc0] sm:$0xff]
    %v145 = vld [vmem:[#allocation5 + $0xc8] sm:$0xff]
    %v146 = vld [vmem:[#allocation5 + $0xd0] sm:$0xff]
    %v147 = vld [vmem:[#allocation5 + $0xd8] sm:$0xff]
    %v148 = vld [vmem:[#allocation5 + $0xe0] sm:$0xff]
    %v149 = vld [vmem:[#allocation5 + $0xe8] sm:$0xff]
    %v150 = vld [vmem:[#allocation5 + $0xf0] sm:$0xff]
    %v151 = vld [vmem:[#allocation5 + $0xf8] sm:$0xff]
    %v152 = vld [vmem:[#allocation5 + $0x100] sm:$0xff]
    %v153 = vld [vmem:[#allocation5 + $0x108] sm:$0xff]
    %v154 = vld [vmem:[#allocation5 + $0x110] sm:$0xff]
    %v155 = vld [vmem:[#allocation5 + $0x118] sm:$0xff]
    %v156 = vld [vmem:[#allocation5 + $0x120] sm:$0xff]
    %v157 = vld [vmem:[#allocation5 + $0x128] sm:$0xff]
    %v158 = vld [vmem:[#allocation5 + $0x130] sm:$0xff]
    %v159 = vld [vmem:[#allocation5 + $0x138] sm:$0xff]
    %v160 = vld [vmem:[#allocation5 + $0x140] sm:$0xff]
    %v161 = vld [vmem:[#allocation5 + $0x148] sm:$0xff]
    %v162 = vld [vmem:[#allocation5 + $0x150] sm:$0xff]
    %v163 = vld [vmem:[#allocation5 + $0x158] sm:$0xff]
    %v164 = vld [vmem:[#allocation5 + $0x160] sm:$0xff]
    %v165 = vld [vmem:[#allocation5 + $0x168] sm:$0xff]
    %v166 = vld [vmem:[#allocation5 + $0x170] sm:$0xff]
    %v167 = vld [vmem:[#allocation5 + $0x178] sm:$0xff]
    %v168 = vld [vmem:[#allocation5 + $0x180] sm:$0xff]
    %v169 = vld [vmem:[#allocation5 + $0x188] sm:$0xff]
    %v170 = vld [vmem:[#allocation5 + $0x190] sm:$0xff]
    %v171 = vld [vmem:[#allocation5 + $0x198] sm:$0xff]
    %v172 = vld [vmem:[#allocation5 + $0x1a0] sm:$0xff]
    %v173 = vld [vmem:[#allocation5 + $0x1a8] sm:$0xff]
    %v174 = vld [vmem:[#allocation5 + $0x1b0] sm:$0xff]
    %v175 = vld [vmem:[#allocation5 + $0x1b8] sm:$0xff]
    %v176 = vld [vmem:[#allocation5 + $0x1c0] sm:$0xff]
    %v177 = vld [vmem:[#allocation5 + $0x1c8] sm:$0xff]
    %v178 = vld [vmem:[#allocation5 + $0x1d0] sm:$0xff]
    %v179 = vld [vmem:[#allocation5 + $0x1d8] sm:$0xff]
    %v180 = vld [vmem:[#allocation5 + $0x1e0] sm:$0xff]
    %v181 = vld [vmem:[#allocation5 + $0x1e8] sm:$0xff]
    %v182 = vld [vmem:[#allocation5 + $0x1f0] sm:$0xff]
    %v183 = vld [vmem:[#allocation5 + $0x1f8] sm:$0xff]
    %v184 = vld [vmem:[#allocation5 + $0x200] sm:$0xff]
    %v185 = vld [vmem:[#allocation5 + $0x208] sm:$0xff]
    %v186 = vld [vmem:[#allocation5 + $0x210] sm:$0xff]
    %v187 = vld [vmem:[#allocation5 + $0x218] sm:$0xff]
    %v188 = vld [vmem:[#allocation5 + $0x220] sm:$0xff]
    %v189 = vld [vmem:[#allocation5 + $0x228] sm:$0xff]
    %v190 = vld [vmem:[#allocation5 + $0x230] sm:$0xff]
    %v191 = vld [vmem:[#allocation5 + $0x238] sm:$0xff]
    %v192 = vld [vmem:[#allocation5 + $0x240] sm:$0xff]
    %v193 = vld [vmem:[#allocation5 + $0x248] sm:$0xff]
    %v194 = vld [vmem:[#allocation5 + $0x250] sm:$0xff]
    %v195 = vld [vmem:[#allocation5 + $0x258] sm:$0xff]
    %v196 = vld [vmem:[#allocation5 + $0x260] sm:$0xff]
    %v197 = vld [vmem:[#allocation5 + $0x268] sm:$0xff]
    %v198 = vld [vmem:[#allocation5 + $0x270] sm:$0xff]
    %v199 = vld [vmem:[#allocation5 + $0x278] sm:$0xff]
    %v200 = vld [vmem:[#allocation5 + $0x280] sm:$0xff]
    %v201 = vld [vmem:[#allocation5 + $0x288] sm:$0xff]
    %v202 = vld [vmem:[#allocation5 + $0x290] sm:$0xff]
    %v203 = vld [vmem:[#allocation5 + $0x298] sm:$0xff]
    %v204 = vld [vmem:[#allocation5 + $0x2a0] sm:$0xff]
    %v205 = vld [vmem:[#allocation5 + $0x2a8] sm:$0xff]
    %v206 = vld [vmem:[#allocation5 + $0x2b0] sm:$0xff]
    %v207 = vld [vmem:[#allocation5 + $0x2b8] sm:$0xff]
    %v208 = vld [vmem:[#allocation5 + $0x2c0] sm:$0xff]
    %v209 = vld [vmem:[#allocation5 + $0x2c8] sm:$0xff]
    %v210 = vld [vmem:[#allocation5 + $0x2d0] sm:$0xff]
    %v211 = vld [vmem:[#allocation5 + $0x2d8] sm:$0xff]
    %v212 = vld [vmem:[#allocation5 + $0x2e0] sm:$0xff]
    %v213 = vld [vmem:[#allocation5 + $0x2e8] sm:$0xff]
    %v214 = vld [vmem:[#allocation5 + $0x2f0] sm:$0xff]
    %v215 = vld [vmem:[#allocation5 + $0x2f8] sm:$0xff]
    %v216 = vld [vmem:[#allocation5 + $0x300] sm:$0xff]
    %v217 = vld [vmem:[#allocation5 + $0x308] sm:$0xff]
    %v218 = vld [vmem:[#allocation5 + $0x310] sm:$0xff]
    %v219 = vld [vmem:[#allocation5 + $0x318] sm:$0xff]
    %v220 = vld [vmem:[#allocation5 + $0x320] sm:$0xff]
    %v221 = vld [vmem:[#allocation5 + $0x328] sm:$0xff]
    %v222 = vld [vmem:[#allocation5 + $0x330] sm:$0xff]
    %v223 = vld [vmem:[#allocation5 + $0x338] sm:$0xff]
    %v224 = vld [vmem:[#allocation5 + $0x340] sm:$0xff]
    %v225 = vld [vmem:[#allocation5 + $0x348] sm:$0xff]
    %v226 = vld [vmem:[#allocation5 + $0x350] sm:$0xff]
    %v227 = vld [vmem:[#allocation5 + $0x358] sm:$0xff]
    %v228 = vld [vmem:[#allocation5 + $0x360] sm:$0xff]
    %v229 = vld [vmem:[#allocation5 + $0x368] sm:$0xff]
    %v230 = vld [vmem:[#allocation5 + $0x370] sm:$0xff]
    %v231 = vld [vmem:[#allocation5 + $0x378] sm:$0xff]
    %v232 = vld [vmem:[#allocation5 + $0x380] sm:$0xff]
    %v233 = vld [vmem:[#allocation5 + $0x388] sm:$0xff]
    %v234 = vld [vmem:[#allocation5 + $0x390] sm:$0xff]
    %v235 = vld [vmem:[#allocation5 + $0x398] sm:$0xff]
    %v236 = vld [vmem:[#allocation5 + $0x3a0] sm:$0xff]
    %v237 = vld [vmem:[#allocation5 + $0x3a8] sm:$0xff]
    %v238 = vld [vmem:[#allocation5 + $0x3b0] sm:$0xff]
    %v239 = vld [vmem:[#allocation5 + $0x3b8] sm:$0xff]
    %v240 = vld [vmem:[#allocation5 + $0x3c0] sm:$0xff]
    %v241 = vld [vmem:[#allocation5 + $0x3c8] sm:$0xff]
    %v242 = vld [vmem:[#allocation5 + $0x3d0] sm:$0xff]
    %v243 = vld [vmem:[#allocation5 + $0x3d8] sm:$0xff]
    %v244 = vld [vmem:[#allocation5 + $0x3e0] sm:$0xff]
    %v245 = vld [vmem:[#allocation5 + $0x3e8] sm:$0xff]
    %v246 = vld [vmem:[#allocation5 + $0x3f0] sm:$0xff]
    %v247 = vld [vmem:[#allocation5 + $0x3f8] sm:$0xff]
    %v248 = vld [vmem:[#allocation5 + $0x400] sm:$0xff]
    %v249 = vld [vmem:[#allocation5 + $0x408] sm:$0xff]
    %v250 = vld [vmem:[#allocation5 + $0x410] sm:$0xff]
    %v251 = vld [vmem:[#allocation5 + $0x418] sm:$0xff]
    %v252 = vld [vmem:[#allocation5 + $0x420] sm:$0xff]
    %v253 = vld [vmem:[#allocation5 + $0x428] sm:$0xff]
    %v254 = vld [vmem:[#allocation5 + $0x430] sm:$0xff]
    %v255 = vld [vmem:[#allocation5 + $0x438] sm:$0xff]
    %v256 = vld [vmem:[#allocation5 + $0x440] sm:$0xff]
    %v257 = vld [vmem:[#allocation5 + $0x448] sm:$0xff]
    %v258 = vld [vmem:[#allocation5 + $0x450] sm:$0xff]
    %v259 = vld [vmem:[#allocation5 + $0x458] sm:$0xff]
    %v260 = vld [vmem:[#allocation5 + $0x460] sm:$0xff]
    %v261 = vld [vmem:[#allocation5 + $0x468] sm:$0xff]
    %v262 = vld [vmem:[#allocation5 + $0x470] sm:$0xff]
    %v263 = vld [vmem:[#allocation5 + $0x478] sm:$0xff]
    %v264 = vld [vmem:[#allocation5 + $0x480] sm:$0xff]
    %v265 = vld [vmem:[#allocation5 + $0x488] sm:$0xff]
    %v266 = vld [vmem:[#allocation5 + $0x490] sm:$0xff]
    %v267 = vld [vmem:[#allocation5 + $0x498] sm:$0xff]
    %v268 = vld [vmem:[#allocation5 + $0x4a0] sm:$0xff]
    %v269 = vld [vmem:[#allocation5 + $0x4a8] sm:$0xff]
    %v270 = vld [vmem:[#allocation5 + $0x4b0] sm:$0xff]
    %v271 = vld [vmem:[#allocation5 + $0x4b8] sm:$0xff]
    %v272 = vld [vmem:[#allocation5 + $0x4c0] sm:$0xff]
    %v273 = vld [vmem:[#allocation5 + $0x4c8] sm:$0xff]
    %v274 = vld [vmem:[#allocation5 + $0x4d0] sm:$0xff]
    %v275 = vld [vmem:[#allocation5 + $0x4d8] sm:$0xff]
    %v276 = vld [vmem:[#allocation5 + $0x4e0] sm:$0xff]
    %v277 = vld [vmem:[#allocation5 + $0x4e8] sm:$0xff]
    %v278 = vld [vmem:[#allocation5 + $0x4f0] sm:$0xff]
    %v279 = vld [vmem:[#allocation5 + $0x4f8] sm:$0xff]
    %v280 = vld [vmem:[#allocation5 + $0x500] sm:$0xff]
    %v281 = vld [vmem:[#allocation5 + $0x508] sm:$0xff]
    %v282 = vld [vmem:[#allocation5 + $0x510] sm:$0xff]
    %v283 = vld [vmem:[#allocation5 + $0x518] sm:$0xff]
    %v284 = vld [vmem:[#allocation5 + $0x520] sm:$0xff]
    %v285 = vld [vmem:[#allocation5 + $0x528] sm:$0xff]
    %v286 = vld [vmem:[#allocation5 + $0x530] sm:$0xff]
    %v287 = vld [vmem:[#allocation5 + $0x538] sm:$0xff]
    %v288 = vld [vmem:[#allocation5 + $0x540] sm:$0xff]
    %v289 = vld [vmem:[#allocation5 + $0x548] sm:$0xff]
    %v290 = vld [vmem:[#allocation5 + $0x550] sm:$0xff]
    %v291 = vld [vmem:[#allocation5 + $0x558] sm:$0xff]
    %v292 = vld [vmem:[#allocation5 + $0x560] sm:$0xff]
    %v293 = vld [vmem:[#allocation5 + $0x568] sm:$0xff]
    %v294 = vld [vmem:[#allocation5 + $0x570] sm:$0xff]
    %v295 = vld [vmem:[#allocation5 + $0x578] sm:$0xff]
    %v296 = vld [vmem:[#allocation5 + $0x580] sm:$0xff]
    %v297 = vld [vmem:[#allocation5 + $0x588] sm:$0xff]
    %v298 = vld [vmem:[#allocation5 + $0x590] sm:$0xff]
    %v299 = vld [vmem:[#allocation5 + $0x598] sm:$0xff]
    %v300 = vld [vmem:[#allocation5 + $0x5a0] sm:$0xff]
    %v301 = vld [vmem:[#allocation5 + $0x5a8] sm:$0xff]
    %v302 = vld [vmem:[#allocation5 + $0x5b0] sm:$0xff]
    %v303 = vld [vmem:[#allocation5 + $0x5b8] sm:$0xff]
    %v304 = vld [vmem:[#allocation5 + $0x5c0] sm:$0xff]
    %v305 = vld [vmem:[#allocation5 + $0x5c8] sm:$0xff]
    %v306 = vld [vmem:[#allocation5 + $0x5d0] sm:$0xff]
    %v307 = vld [vmem:[#allocation5 + $0x5d8] sm:$0xff]
    %v308 = vld [vmem:[#allocation5 + $0x5e0] sm:$0xff]
    %v309 = vld [vmem:[#allocation5 + $0x5e8] sm:$0xff]
    %v310 = vld [vmem:[#allocation5 + $0x5f0] sm:$0xff]
    %v311 = vld [vmem:[#allocation5 + $0x5f8] sm:$0xff]
    %v312 = vld [vmem:[#allocation5 + $0x600] sm:$0xff]
    %v313 = vld [vmem:[#allocation5 + $0x608] sm:$0xff]
    %v314 = vld [vmem:[#allocation5 + $0x610] sm:$0xff]
    %v315 = vld [vmem:[#allocation5 + $0x618] sm:$0xff]
    %v316 = vld [vmem:[#allocation5 + $0x620] sm:$0xff]
    %v317 = vld [vmem:[#allocation5 + $0x628] sm:$0xff]
    %v318 = vld [vmem:[#allocation5 + $0x630] sm:$0xff]
    %v319 = vld [vmem:[#allocation5 + $0x638] sm:$0xff]
    %v320 = vld [vmem:[#allocation5 + $0x640] sm:$0xff]
    %v321 = vld [vmem:[#allocation5 + $0x648] sm:$0xff]
    %v322 = vld [vmem:[#allocation5 + $0x650] sm:$0xff]
    %v323 = vld [vmem:[#allocation5 + $0x658] sm:$0xff]
    %v324 = vld [vmem:[#allocation5 + $0x660] sm:$0xff]
    %v325 = vld [vmem:[#allocation5 + $0x668] sm:$0xff]
    %v326 = vld [vmem:[#allocation5 + $0x670] sm:$0xff]
    %v327 = vld [vmem:[#allocation5 + $0x678] sm:$0xff]
    %v328 = vld [vmem:[#allocation5 + $0x680] sm:$0xff]
    %v329 = vld [vmem:[#allocation5 + $0x688] sm:$0xff]
    %v330 = vld [vmem:[#allocation5 + $0x690] sm:$0xff]
    %v331 = vld [vmem:[#allocation5 + $0x698] sm:$0xff]
    %v332 = vld [vmem:[#allocation5 + $0x6a0] sm:$0xff]
    %v333 = vld [vmem:[#allocation5 + $0x6a8] sm:$0xff]
    %v334 = vld [vmem:[#allocation5 + $0x6b0] sm:$0xff]
    %v335 = vld [vmem:[#allocation5 + $0x6b8] sm:$0xff]
    %v336 = vld [vmem:[#allocation5 + $0x6c0] sm:$0xff]
    %v337 = vld [vmem:[#allocation5 + $0x6c8] sm:$0xff]
    %v338 = vld [vmem:[#allocation5 + $0x6d0] sm:$0xff]
    %v339 = vld [vmem:[#allocation5 + $0x6d8] sm:$0xff]
    %v340 = vld [vmem:[#allocation5 + $0x6e0] sm:$0xff]
    %v341 = vld [vmem:[#allocation5 + $0x6e8] sm:$0xff]
    %v342 = vld [vmem:[#allocation5 + $0x6f0] sm:$0xff]
    %v343 = vld [vmem:[#allocation5 + $0x6f8] sm:$0xff]
    %v344 = vld [vmem:[#allocation5 + $0x700] sm:$0xff]
    %v345 = vld [vmem:[#allocation5 + $0x708] sm:$0xff]
    %v346 = vld [vmem:[#allocation5 + $0x710] sm:$0xff]
    %v347 = vld [vmem:[#allocation5 + $0x718] sm:$0xff]
    %v348 = vld [vmem:[#allocation5 + $0x720] sm:$0xff]
    %v349 = vld [vmem:[#allocation5 + $0x728] sm:$0xff]
    %v350 = vld [vmem:[#allocation5 + $0x730] sm:$0xff]
    %v351 = vld [vmem:[#allocation5 + $0x738] sm:$0xff]
    %v352 = vld [vmem:[#allocation5 + $0x740] sm:$0xff]
    %v353 = vld [vmem:[#allocation5 + $0x748] sm:$0xff]
    %v354 = vld [vmem:[#allocation5 + $0x750] sm:$0xff]
    %v355 = vld [vmem:[#allocation5 + $0x758] sm:$0xff]
    %v356 = vld [vmem:[#allocation5 + $0x760] sm:$0xff]
    %v357 = vld [vmem:[#allocation5 + $0x768] sm:$0xff]
    %v358 = vld [vmem:[#allocation5 + $0x770] sm:$0xff]
    %v359 = vld [vmem:[#allocation5 + $0x778] sm:$0xff]
    %v360 = vld [vmem:[#allocation5 + $0x780] sm:$0xff]
    %v361 = vld [vmem:[#allocation5 + $0x788] sm:$0xff]
    %v362 = vld [vmem:[#allocation5 + $0x790] sm:$0xff]
    %v363 = vld [vmem:[#allocation5 + $0x798] sm:$0xff]
    %v364 = vld [vmem:[#allocation5 + $0x7a0] sm:$0xff]
    %v365 = vld [vmem:[#allocation5 + $0x7a8] sm:$0xff]
    %v366 = vld [vmem:[#allocation5 + $0x7b0] sm:$0xff]
    %v367 = vld [vmem:[#allocation5 + $0x7b8] sm:$0xff]
    %v368 = vld [vmem:[#allocation5 + $0x7c0] sm:$0xff]
    %v369 = vld [vmem:[#allocation5 + $0x7c8] sm:$0xff]
    %v370 = vld [vmem:[#allocation5 + $0x7d0] sm:$0xff]
    %v371 = vld [vmem:[#allocation5 + $0x7d8] sm:$0xff]
    %v372 = vld [vmem:[#allocation5 + $0x7e0] sm:$0xff]
    %v373 = vld [vmem:[#allocation5 + $0x7e8] sm:$0xff]
    %v374 = vld [vmem:[#allocation5 + $0x7f0] sm:$0xff]
    %v375 = vld [vmem:[#allocation5 + $0x7f8] sm:$0xff]
    %v376 = vld [vmem:[#allocation5 + $0x800] sm:$0xff]
    %v377 = vld [vmem:[#allocation5 + $0x808] sm:$0xff]
    %v378 = vld [vmem:[#allocation5 + $0x810] sm:$0xff]
    %v379 = vld [vmem:[#allocation5 + $0x818] sm:$0xff]
    %v380 = vld [vmem:[#allocation5 + $0x820] sm:$0xff]
    %v381 = vld [vmem:[#allocation5 + $0x828] sm:$0xff]
    %v382 = vld [vmem:[#allocation5 + $0x830] sm:$0xff]
    %v383 = vld [vmem:[#allocation5 + $0x838] sm:$0xff]
    %v384 = vld [vmem:[#allocation5 + $0x840] sm:$0xff]
    %v385 = vld [vmem:[#allocation5 + $0x848] sm:$0xff]
    %v386 = vld [vmem:[#allocation5 + $0x850] sm:$0xff]
    %v387 = vld [vmem:[#allocation5 + $0x858] sm:$0xff]
    %v388 = vld [vmem:[#allocation5 + $0x860] sm:$0xff]
    %v389 = vld [vmem:[#allocation5 + $0x868] sm:$0xff]
    %v390 = vld [vmem:[#allocation5 + $0x870] sm:$0xff]
    %v391 = vld [vmem:[#allocation5 + $0x878] sm:$0xff]
    %v392 = vld [vmem:[#allocation5 + $0x880] sm:$0xff]
    %v393 = vld [vmem:[#allocation5 + $0x888] sm:$0xff]
    %v394 = vld [vmem:[#allocation5 + $0x890] sm:$0xff]
    %v395 = vld [vmem:[#allocation5 + $0x898] sm:$0xff]
    %v396 = vld [vmem:[#allocation5 + $0x8a0] sm:$0xff]
    %v397 = vld [vmem:[#allocation5 + $0x8a8] sm:$0xff]
    %v398 = vld [vmem:[#allocation5 + $0x8b0] sm:$0xff]
    %v399 = vld [vmem:[#allocation5 + $0x8b8] sm:$0xff]
    %v400 = vld [vmem:[#allocation5 + $0x8c0] sm:$0xff]
    %v401 = vld [vmem:[#allocation5 + $0x8c8] sm:$0xff]
    %v402 = vld [vmem:[#allocation5 + $0x8d0] sm:$0xff]
    %v403 = vld [vmem:[#allocation5 + $0x8d8] sm:$0xff]
    %v404 = vld [vmem:[#allocation5 + $0x8e0] sm:$0xff]
    %v405 = vld [vmem:[#allocation5 + $0x8e8] sm:$0xff]
    %v406 = vld [vmem:[#allocation5 + $0x8f0] sm:$0xff]
    %v407 = vld [vmem:[#allocation5 + $0x8f8] sm:$0xff]
    %v408 = vld [vmem:[#allocation7] sm:$0x7]
    %v410 = vlaneseq
    %v411 = vshrl.u32 %v410, 7
    %v412 = vsub.s32 0, %v411
    %v413 = vrot.slane %v408, %v412
    %v414 = vlaneseq
    %v415 = vshrl.u32 %v414, 7
    %v416 = vsub.s32 1, %v415
    %v417 = vrot.slane %v408, %v416
    %v418 = vlaneseq
    %v419 = vshrl.u32 %v418, 7
    %v420 = vsub.s32 2, %v419
    %v421 = vrot.slane %v408, %v420
    %425 = vmatprep.subr.mxu0 %v121
    %426 = vmatpush1.msra.mxu0 %v120
    %427 = vmatprep.subr.mxu0 %v124
    %428 = vmatpush1.msra.mxu0 %v123
    %429 = vmatprep.subr.mxu0 %v127
    %430 = vmatpush1.msra.mxu0 %v126
    %431 = vmatprep.subr.mxu0 %v130
    %432 = vmatpush1.msra.mxu0 %v129
    %433 = vmatprep.subr.mxu0 %v133
    %434 = vmatpush1.msra.mxu0 %v132
    %435 = vmatprep.subr.mxu0 %v136
    %436 = vmatpush1.msra.mxu0 %v135
    %437 = vmatprep.subr.mxu0 %v139
    %438 = vmatpush1.msra.mxu0 %v138
    %439 = vmatprep.subr.mxu0 %v142
    %440 = vmatpush1.msra.mxu0 %v141
    %441 = vmatprep.subr.mxu0 %v145
    %442 = vmatpush1.msra.mxu0 %v144
    %443 = vmatprep.subr.mxu0 %v148
    %444 = vmatpush1.msra.mxu0 %v147
    %445 = vmatprep.subr.mxu0 %v151
    %446 = vmatpush1.msra.mxu0 %v150
    %447 = vmatprep.subr.mxu0 %v154
    %448 = vmatpush1.msra.mxu0 %v153
    %449 = vmatprep.subr.mxu0 %v157
    %450 = vmatpush1.msra.mxu0 %v156
    %451 = vmatprep.subr.mxu0 %v160
    %452 = vmatpush1.msra.mxu0 %v159
    %453 = vmatprep.subr.mxu0 %v163
    %454 = vmatpush1.msra.mxu0 %v162
    %455 = vmatprep.subr.mxu0 %v166
    %456 = vmatpush1.msra.mxu0 %v165
    %457 = vmatprep.subr.mxu0 %v169
    %458 = vmatpush1.msra.mxu0 %v168
    %459 = vmatprep.subr.mxu0 %v172
    %460 = vmatpush1.msra.mxu0 %v171
    %461 = vmatprep.subr.mxu0 %v175
    %462 = vmatpush1.msra.mxu0 %v174
    %463 = vmatprep.subr.mxu0 %v178
    %464 = vmatpush1.msra.mxu0 %v177
    %465 = vmatprep.subr.mxu0 %v181
    %466 = vmatpush1.msra.mxu0 %v180
    %467 = vmatprep.subr.mxu0 %v184
    %468 = vmatpush1.msra.mxu0 %v183
    %469 = vmatprep.subr.mxu0 %v187
    %470 = vmatpush1.msra.mxu0 %v186
    %471 = vmatprep.subr.mxu0 %v190
    %472 = vmatpush1.msra.mxu0 %v189
    %473 = vmatprep.subr.mxu0 %v193
    %474 = vmatpush1.msra.mxu0 %v192
    %475 = vmatprep.subr.mxu0 %v196
    %476 = vmatpush1.msra.mxu0 %v195
    %477 = vmatprep.subr.mxu0 %v199
    %478 = vmatpush1.msra.mxu0 %v198
    %479 = vmatprep.subr.mxu0 %v202
    %480 = vmatpush1.msra.mxu0 %v201
    %481 = vmatprep.subr.mxu0 %v205
    %482 = vmatpush1.msra.mxu0 %v204
    %483 = vmatprep.subr.mxu0 %v208
    %484 = vmatpush1.msra.mxu0 %v207
    %485 = vmatprep.subr.mxu0 %v211
    %486 = vmatpush1.msra.mxu0 %v210
    %487 = vmatprep.subr.mxu0 %v214
    %488 = vmatpush1.msra.mxu0 %v213
    %489 = vmatprep.mubr.f32.mxu0 %v115
    %490 = vmatmul.mubr.f32.gmra.mrb[0].mxu0 %v114
    %v491 = vpop.f32.mrb[0].mxu0
    %v492 = vadd.f32 %v413, %v491
    %v493 = vpop.f32.mrb[0].mxu0
    %v494 = vadd.f32 %v417, %v493
    %495 = vdwg.mxu0
    %496 = vmatprep.subr.mxu0 %v217
    %497 = vmatpush1.msra.mxu0 %v216
    %498 = vmatprep.subr.mxu0 %v220
    %499 = vmatpush1.msra.mxu0 %v219
    %500 = vmatprep.subr.mxu0 %v223
    %501 = vmatpush1.msra.mxu0 %v222
    %502 = vmatprep.subr.mxu0 %v226
    %503 = vmatpush1.msra.mxu0 %v225
    %504 = vmatprep.subr.mxu0 %v229
    %505 = vmatpush1.msra.mxu0 %v228
    %506 = vmatprep.subr.mxu0 %v232
    %507 = vmatpush1.msra.mxu0 %v231
    %508 = vmatprep.subr.mxu0 %v235
    %509 = vmatpush1.msra.mxu0 %v234
    %510 = vmatprep.subr.mxu0 %v238
    %511 = vmatpush1.msra.mxu0 %v237
    %512 = vmatprep.subr.mxu0 %v241
    %513 = vmatpush1.msra.mxu0 %v240
    %514 = vmatprep.subr.mxu0 %v244
    %515 = vmatpush1.msra.mxu0 %v243
    %516 = vmatprep.subr.mxu0 %v247
    %517 = vmatpush1.msra.mxu0 %v246
    %518 = vmatprep.subr.mxu0 %v250
    %519 = vmatpush1.msra.mxu0 %v249
    %520 = vmatprep.subr.mxu0 %v253
    %521 = vmatpush1.msra.mxu0 %v252
    %522 = vmatprep.subr.mxu0 %v256
    %523 = vmatpush1.msra.mxu0 %v255
    %524 = vmatprep.subr.mxu0 %v259
    %525 = vmatpush1.msra.mxu0 %v258
    %526 = vmatprep.subr.mxu0 %v262
    %527 = vmatpush1.msra.mxu0 %v261
    %528 = vmatprep.subr.mxu0 %v265
    %529 = vmatpush1.msra.mxu0 %v264
    %530 = vmatprep.subr.mxu0 %v268
    %531 = vmatpush1.msra.mxu0 %v267
    %532 = vmatprep.subr.mxu0 %v271
    %533 = vmatpush1.msra.mxu0 %v270
    %534 = vmatprep.subr.mxu0 %v274
    %535 = vmatpush1.msra.mxu0 %v273
    %536 = vmatprep.subr.mxu0 %v277
    %537 = vmatpush1.msra.mxu0 %v276
    %538 = vmatprep.subr.mxu0 %v280
    %539 = vmatpush1.msra.mxu0 %v279
    %540 = vmatprep.subr.mxu0 %v283
    %541 = vmatpush1.msra.mxu0 %v282
    %542 = vmatprep.subr.mxu0 %v286
    %543 = vmatpush1.msra.mxu0 %v285
    %544 = vmatprep.subr.mxu0 %v289
    %545 = vmatpush1.msra.mxu0 %v288
    %546 = vmatprep.subr.mxu0 %v292
    %547 = vmatpush1.msra.mxu0 %v291
    %548 = vmatprep.subr.mxu0 %v295
    %549 = vmatpush1.msra.mxu0 %v294
    %550 = vmatprep.subr.mxu0 %v298
    %551 = vmatpush1.msra.mxu0 %v297
    %552 = vmatprep.subr.mxu0 %v301
    %553 = vmatpush1.msra.mxu0 %v300
    %554 = vmatprep.subr.mxu0 %v304
    %555 = vmatpush1.msra.mxu0 %v303
    %556 = vmatprep.subr.mxu0 %v307
    %557 = vmatpush1.msra.mxu0 %v306
    %558 = vmatprep.subr.mxu0 %v310
    %559 = vmatpush1.msra.mxu0 %v309
    %560 = vmatprep.mubr.f32.mxu0 %v117
    %561 = vmatmul.mubr.f32.gmra.mrb[0].mxu0 %v116
    %v562 = vpop.f32.mrb[0].mxu0
    %v563 = vadd.f32 %v492, %v562
    %v564 = vpop.f32.mrb[0].mxu0
    %v565 = vadd.f32 %v494, %v564
    %566 = vdwg.mxu0
    %567 = vmatprep.subr.mxu0 %v313
    %568 = vmatpush1.msra.mxu0 %v312
    %569 = vmatprep.subr.mxu0 %v316
    %570 = vmatpush1.msra.mxu0 %v315
    %571 = vmatprep.subr.mxu0 %v319
    %572 = vmatpush1.msra.mxu0 %v318
    %573 = vmatprep.subr.mxu0 %v322
    %574 = vmatpush1.msra.mxu0 %v321
    %575 = vmatprep.subr.mxu0 %v325
    %576 = vmatpush1.msra.mxu0 %v324
    %577 = vmatprep.subr.mxu0 %v328
    %578 = vmatpush1.msra.mxu0 %v327
    %579 = vmatprep.subr.mxu0 %v331
    %580 = vmatpush1.msra.mxu0 %v330
    %581 = vmatprep.subr.mxu0 %v334
    %582 = vmatpush1.msra.mxu0 %v333
    %583 = vmatprep.subr.mxu0 %v337
    %584 = vmatpush1.msra.mxu0 %v336
    %585 = vmatprep.subr.mxu0 %v340
    %586 = vmatpush1.msra.mxu0 %v339
    %587 = vmatprep.subr.mxu0 %v343
    %588 = vmatpush1.msra.mxu0 %v342
    %589 = vmatprep.subr.mxu0 %v346
    %590 = vmatpush1.msra.mxu0 %v345
    %591 = vmatprep.subr.mxu0 %v349
    %592 = vmatpush1.msra.mxu0 %v348
    %593 = vmatprep.subr.mxu0 %v352
    %594 = vmatpush1.msra.mxu0 %v351
    %595 = vmatprep.subr.mxu0 %v355
    %596 = vmatpush1.msra.mxu0 %v354
    %597 = vmatprep.subr.mxu0 %v358
    %598 = vmatpush1.msra.mxu0 %v357
    %599 = vmatprep.subr.mxu0 %v361
    %600 = vmatpush1.msra.mxu0 %v360
    %601 = vmatprep.subr.mxu0 %v364
    %602 = vmatpush1.msra.mxu0 %v363
    %603 = vmatprep.subr.mxu0 %v367
    %604 = vmatpush1.msra.mxu0 %v366
    %605 = vmatprep.subr.mxu0 %v370
    %606 = vmatpush1.msra.mxu0 %v369
    %607 = vmatprep.subr.mxu0 %v373
    %608 = vmatpush1.msra.mxu0 %v372
    %609 = vmatprep.subr.mxu0 %v376
    %610 = vmatpush1.msra.mxu0 %v375
    %611 = vmatprep.subr.mxu0 %v379
    %612 = vmatpush1.msra.mxu0 %v378
    %613 = vmatprep.subr.mxu0 %v382
    %614 = vmatpush1.msra.mxu0 %v381
    %615 = vmatprep.subr.mxu0 %v385
    %616 = vmatpush1.msra.mxu0 %v384
    %617 = vmatprep.subr.mxu0 %v388
    %618 = vmatpush1.msra.mxu0 %v387
    %619 = vmatprep.subr.mxu0 %v391
    %620 = vmatpush1.msra.mxu0 %v390
    %621 = vmatprep.subr.mxu0 %v394
    %622 = vmatpush1.msra.mxu0 %v393
    %623 = vmatprep.subr.mxu0 %v397
    %624 = vmatpush1.msra.mxu0 %v396
    %625 = vmatprep.subr.mxu0 %v400
    %626 = vmatpush1.msra.mxu0 %v399
    %627 = vmatprep.subr.mxu0 %v403
    %628 = vmatpush1.msra.mxu0 %v402
    %629 = vmatprep.subr.mxu0 %v406
    %630 = vmatpush1.msra.mxu0 %v405
    %631 = vmatprep.mubr.f32.mxu0 %v119
    %632 = vmatmul.mubr.f32.gmra.mrb[0].mxu0 %v118
    %v633 = vpop.f32.mrb[0].mxu0
    %v634 = vadd.f32 %v563, %v633
    %v635 = vpop.f32.mrb[0].mxu0
    %v636 = vadd.f32 %v565, %v635
    %637 = vdwg.mxu0
    %638 = vmatprep.subr.mxu0 0.0
    %639 = vmatpush1.msra.mxu0 %v122
    %640 = vmatprep.subr.mxu0 0.0
    %641 = vmatpush1.msra.mxu0 %v125
    %642 = vmatprep.subr.mxu0 0.0
    %643 = vmatpush1.msra.mxu0 %v128
    %644 = vmatprep.subr.mxu0 0.0
    %645 = vmatpush1.msra.mxu0 %v131
    %646 = vmatprep.subr.mxu0 0.0
    %647 = vmatpush1.msra.mxu0 %v134
    %648 = vmatprep.subr.mxu0 0.0
    %649 = vmatpush1.msra.mxu0 %v137
    %650 = vmatprep.subr.mxu0 0.0
    %651 = vmatpush1.msra.mxu0 %v140
    %652 = vmatprep.subr.mxu0 0.0
    %653 = vmatpush1.msra.mxu0 %v143
    %654 = vmatprep.subr.mxu0 0.0
    %655 = vmatpush1.msra.mxu0 %v146
    %656 = vmatprep.subr.mxu0 0.0
    %657 = vmatpush1.msra.mxu0 %v149
    %658 = vmatprep.subr.mxu0 0.0
    %659 = vmatpush1.msra.mxu0 %v152
    %660 = vmatprep.subr.mxu0 0.0
    %661 = vmatpush1.msra.mxu0 %v155
    %662 = vmatprep.subr.mxu0 0.0
    %663 = vmatpush1.msra.mxu0 %v158
    %664 = vmatprep.subr.mxu0 0.0
    %665 = vmatpush1.msra.mxu0 %v161
    %666 = vmatprep.subr.mxu0 0.0
    %667 = vmatpush1.msra.mxu0 %v164
    %668 = vmatprep.subr.mxu0 0.0
    %669 = vmatpush1.msra.mxu0 %v167
    %670 = vmatprep.subr.mxu0 0.0
    %671 = vmatpush1.msra.mxu0 %v170
    %672 = vmatprep.subr.mxu0 0.0
    %673 = vmatpush1.msra.mxu0 %v173
    %674 = vmatprep.subr.mxu0 0.0
    %675 = vmatpush1.msra.mxu0 %v176
    %676 = vmatprep.subr.mxu0 0.0
    %677 = vmatpush1.msra.mxu0 %v179
    %678 = vmatprep.subr.mxu0 0.0
    %679 = vmatpush1.msra.mxu0 %v182
    %680 = vmatprep.subr.mxu0 0.0
    %681 = vmatpush1.msra.mxu0 %v185
    %682 = vmatprep.subr.mxu0 0.0
    %683 = vmatpush1.msra.mxu0 %v188
    %684 = vmatprep.subr.mxu0 0.0
    %685 = vmatpush1.msra.mxu0 %v191
    %686 = vmatprep.subr.mxu0 0.0
    %687 = vmatpush1.msra.mxu0 %v194
    %688 = vmatprep.subr.mxu0 0.0
    %689 = vmatpush1.msra.mxu0 %v197
    %690 = vmatprep.subr.mxu0 0.0
    %691 = vmatpush1.msra.mxu0 %v200
    %692 = vmatprep.subr.mxu0 0.0
    %693 = vmatpush1.msra.mxu0 %v203
    %694 = vmatprep.subr.mxu0 0.0
    %695 = vmatpush1.msra.mxu0 %v206
    %696 = vmatprep.subr.mxu0 0.0
    %697 = vmatpush1.msra.mxu0 %v209
    %698 = vmatprep.subr.mxu0 0.0
    %699 = vmatpush1.msra.mxu0 %v212
    %700 = vmatprep.subr.mxu0 0.0
    %701 = vmatpush1.msra.mxu0 %v215
    %702 = vmatprep.mubr.f32.mxu0 %v115
    %703 = vmatmul.mubr.f32.gmra.mrb[0].mxu0 %v114
    %v704 = vpop.f32.mrb[0].mxu0
    %v705 = vadd.f32 %v421, %v704
    %v706 = vpop.f32.mrb[0].mxu0
    %707 = vdwg.mxu0
    %708 = vmatprep.subr.mxu0 0.0
    %709 = vmatpush1.msra.mxu0 %v218
    %710 = vmatprep.subr.mxu0 0.0
    %711 = vmatpush1.msra.mxu0 %v221
    %712 = vmatprep.subr.mxu0 0.0
    %713 = vmatpush1.msra.mxu0 %v224
    %714 = vmatprep.subr.mxu0 0.0
    %715 = vmatpush1.msra.mxu0 %v227
    %716 = vmatprep.subr.mxu0 0.0
    %717 = vmatpush1.msra.mxu0 %v230
    %718 = vmatprep.subr.mxu0 0.0
    %719 = vmatpush1.msra.mxu0 %v233
    %720 = vmatprep.subr.mxu0 0.0
    %721 = vmatpush1.msra.mxu0 %v236
    %722 = vmatprep.subr.mxu0 0.0
    %723 = vmatpush1.msra.mxu0 %v239
    %724 = vmatprep.subr.mxu0 0.0
    %725 = vmatpush1.msra.mxu0 %v242
    %726 = vmatprep.subr.mxu0 0.0
    %727 = vmatpush1.msra.mxu0 %v245
    %728 = vmatprep.subr.mxu0 0.0
    %729 = vmatpush1.msra.mxu0 %v248
    %730 = vmatprep.subr.mxu0 0.0
    %731 = vmatpush1.msra.mxu0 %v251
    %732 = vmatprep.subr.mxu0 0.0
    %733 = vmatpush1.msra.mxu0 %v254
    %734 = vmatprep.subr.mxu0 0.0
    %735 = vmatpush1.msra.mxu0 %v257
    %736 = vmatprep.subr.mxu0 0.0
    %737 = vmatpush1.msra.mxu0 %v260
    %738 = vmatprep.subr.mxu0 0.0
    %739 = vmatpush1.msra.mxu0 %v263
    %740 = vmatprep.subr.mxu0 0.0
    %741 = vmatpush1.msra.mxu0 %v266
    %742 = vmatprep.subr.mxu0 0.0
    %743 = vmatpush1.msra.mxu0 %v269
    %744 = vmatprep.subr.mxu0 0.0
    %745 = vmatpush1.msra.mxu0 %v272
    %746 = vmatprep.subr.mxu0 0.0
    %747 = vmatpush1.msra.mxu0 %v275
    %748 = vmatprep.subr.mxu0 0.0
    %749 = vmatpush1.msra.mxu0 %v278
    %750 = vmatprep.subr.mxu0 0.0
    %751 = vmatpush1.msra.mxu0 %v281
    %752 = vmatprep.subr.mxu0 0.0
    %753 = vmatpush1.msra.mxu0 %v284
    %754 = vmatprep.subr.mxu0 0.0
    %755 = vmatpush1.msra.mxu0 %v287
    %756 = vmatprep.subr.mxu0 0.0
    %757 = vmatpush1.msra.mxu0 %v290
    %758 = vmatprep.subr.mxu0 0.0
    %759 = vmatpush1.msra.mxu0 %v293
    %760 = vmatprep.subr.mxu0 0.0
    %761 = vmatpush1.msra.mxu0 %v296
    %762 = vmatprep.subr.mxu0 0.0
    %763 = vmatpush1.msra.mxu0 %v299
    %764 = vmatprep.subr.mxu0 0.0
    %765 = vmatpush1.msra.mxu0 %v302
    %766 = vmatprep.subr.mxu0 0.0
    %767 = vmatpush1.msra.mxu0 %v305
    %768 = vmatprep.subr.mxu0 0.0
    %769 = vmatpush1.msra.mxu0 %v308
    %770 = vmatprep.subr.mxu0 0.0
    %771 = vmatpush1.msra.mxu0 %v311
    %772 = vmatprep.mubr.f32.mxu0 %v117
    %773 = vmatmul.mubr.f32.gmra.mrb[0].mxu0 %v116
    %v774 = vpop.f32.mrb[0].mxu0
    %v775 = vadd.f32 %v705, %v774
    %v776 = vpop.f32.mrb[0].mxu0
    %777 = vdwg.mxu0
    %778 = vmatprep.subr.mxu0 0.0
    %779 = vmatpush1.msra.mxu0 %v314
    %780 = vmatprep.subr.mxu0 0.0
    %781 = vmatpush1.msra.mxu0 %v317
    %782 = vmatprep.subr.mxu0 0.0
    %783 = vmatpush1.msra.mxu0 %v320
    %784 = vmatprep.subr.mxu0 0.0
    %785 = vmatpush1.msra.mxu0 %v323
    %786 = vmatprep.subr.mxu0 0.0
    %787 = vmatpush1.msra.mxu0 %v326
    %788 = vmatprep.subr.mxu0 0.0
    %789 = vmatpush1.msra.mxu0 %v329
    %790 = vmatprep.subr.mxu0 0.0
    %791 = vmatpush1.msra.mxu0 %v332
    %792 = vmatprep.subr.mxu0 0.0
    %793 = vmatpush1.msra.mxu0 %v335
    %794 = vmatprep.subr.mxu0 0.0
    %795 = vmatpush1.msra.mxu0 %v338
    %796 = vmatprep.subr.mxu0 0.0
    %797 = vmatpush1.msra.mxu0 %v341
    %798 = vmatprep.subr.mxu0 0.0
    %799 = vmatpush1.msra.mxu0 %v344
    %800 = vmatprep.subr.mxu0 0.0
    %801 = vmatpush1.msra.mxu0 %v347
    %802 = vmatprep.subr.mxu0 0.0
    %803 = vmatpush1.msra.mxu0 %v350
    %804 = vmatprep.subr.mxu0 0.0
    %805 = vmatpush1.msra.mxu0 %v353
    %806 = vmatprep.subr.mxu0 0.0
    %807 = vmatpush1.msra.mxu0 %v356
    %808 = vmatprep.subr.mxu0 0.0
    %809 = vmatpush1.msra.mxu0 %v359
    %810 = vmatprep.subr.mxu0 0.0
    %811 = vmatpush1.msra.mxu0 %v362
    %812 = vmatprep.subr.mxu0 0.0
    %813 = vmatpush1.msra.mxu0 %v365
    %814 = vmatprep.subr.mxu0 0.0
    %815 = vmatpush1.msra.mxu0 %v368
    %816 = vmatprep.subr.mxu0 0.0
    %817 = vmatpush1.msra.mxu0 %v371
    %818 = vmatprep.subr.mxu0 0.0
    %819 = vmatpush1.msra.mxu0 %v374
    %820 = vmatprep.subr.mxu0 0.0
    %821 = vmatpush1.msra.mxu0 %v377
    %822 = vmatprep.subr.mxu0 0.0
    %823 = vmatpush1.msra.mxu0 %v380
    %824 = vmatprep.subr.mxu0 0.0
    %825 = vmatpush1.msra.mxu0 %v383
    %826 = vmatprep.subr.mxu0 0.0
    %827 = vmatpush1.msra.mxu0 %v386
    %828 = vmatprep.subr.mxu0 0.0
    %829 = vmatpush1.msra.mxu0 %v389
    %830 = vmatprep.subr.mxu0 0.0
    %831 = vmatpush1.msra.mxu0 %v392
    %832 = vmatprep.subr.mxu0 0.0
    %833 = vmatpush1.msra.mxu0 %v395
    %834 = vmatprep.subr.mxu0 0.0
    %835 = vmatpush1.msra.mxu0 %v398
    %836 = vmatprep.subr.mxu0 0.0
    %837 = vmatpush1.msra.mxu0 %v401
    %838 = vmatprep.subr.mxu0 0.0
    %839 = vmatpush1.msra.mxu0 %v404
    %840 = vmatprep.subr.mxu0 0.0
    %841 = vmatpush1.msra.mxu0 %v407
    %842 = vmatprep.mubr.f32.mxu0 %v119
    %843 = vmatmul.mubr.f32.gmra.mrb[0].mxu0 %v118
    %v844 = vpop.f32.mrb[0].mxu0
    %v845 = vadd.f32 %v775, %v844
    %v846 = vpop.f32.mrb[0].mxu0
    %847 = vdwg.mxu0
    %v848 = vmax.f32 %v634, 0.0
    %v849 = vmax.f32 %v636, 0.0
    %v850 = vmax.f32 %v845, 0.0
    %v851 = vld [vmem:[#allocation8] sm:$0xff]
    %v852 = vld [vmem:[#allocation8 + $0x8] sm:$0xff]
    %v853 = vld [vmem:[#allocation8 + $0x10] sm:$0xff]
    %v854 = vld [vmem:[#allocation8 + $0x18] sm:$0xff]
    %v855 = vld [vmem:[#allocation8 + $0x20] sm:$0xff]
    %v856 = vld [vmem:[#allocation8 + $0x28] sm:$0xff]
    %v857 = vld [vmem:[#allocation8 + $0x30] sm:$0xff]
    %v858 = vld [vmem:[#allocation8 + $0x38] sm:$0xff]
    %v859 = vld [vmem:[#allocation8 + $0x40] sm:$0xff]
    %v860 = vld [vmem:[#allocation8 + $0x48] sm:$0xff]
    %v861 = vld [vmem:[#allocation8 + $0x50] sm:$0xff]
    %v862 = vld [vmem:[#allocation8 + $0x58] sm:$0xff]
    %v863 = vld [vmem:[#allocation8 + $0x60] sm:$0xff]
    %v864 = vld [vmem:[#allocation8 + $0x68] sm:$0xff]
    %v865 = vld [vmem:[#allocation8 + $0x70] sm:$0xff]
    %v866 = vld [vmem:[#allocation8 + $0x78] sm:$0xff]
    %v867 = vld [vmem:[#allocation8 + $0x80] sm:$0xff]
    %v868 = vld [vmem:[#allocation8 + $0x88] sm:$0xff]
    %v869 = vld [vmem:[#allocation8 + $0x90] sm:$0xff]
    %v870 = vld [vmem:[#allocation8 + $0x98] sm:$0xff]
    %v871 = vld [vmem:[#allocation8 + $0xa0] sm:$0xff]
    %v872 = vld [vmem:[#allocation8 + $0xa8] sm:$0xff]
    %v873 = vld [vmem:[#allocation8 + $0xb0] sm:$0xff]
    %v874 = vld [vmem:[#allocation8 + $0xb8] sm:$0xff]
    %v875 = vld [vmem:[#allocation8 + $0xc0] sm:$0xff]
    %v876 = vld [vmem:[#allocation8 + $0xc8] sm:$0xff]
    %v877 = vld [vmem:[#allocation8 + $0xd0] sm:$0xff]
    %v878 = vld [vmem:[#allocation8 + $0xd8] sm:$0xff]
    %v879 = vld [vmem:[#allocation8 + $0xe0] sm:$0xff]
    %v880 = vld [vmem:[#allocation8 + $0xe8] sm:$0xff]
    %v881 = vld [vmem:[#allocation8 + $0xf0] sm:$0xff]
    %v882 = vld [vmem:[#allocation8 + $0xf8] sm:$0xff]
    %v883 = vld [vmem:[#allocation8 + $0x100] sm:$0xff]
    %v884 = vld [vmem:[#allocation8 + $0x108] sm:$0xff]
    %v885 = vld [vmem:[#allocation8 + $0x110] sm:$0xff]
    %v886 = vld [vmem:[#allocation8 + $0x118] sm:$0xff]
    %v887 = vld [vmem:[#allocation8 + $0x120] sm:$0xff]
    %v888 = vld [vmem:[#allocation8 + $0x128] sm:$0xff]
    %v889 = vld [vmem:[#allocation8 + $0x130] sm:$0xff]
    %v890 = vld [vmem:[#allocation8 + $0x138] sm:$0xff]
    %v891 = vld [vmem:[#allocation8 + $0x140] sm:$0xff]
    %v892 = vld [vmem:[#allocation8 + $0x148] sm:$0xff]
    %v893 = vld [vmem:[#allocation8 + $0x150] sm:$0xff]
    %v894 = vld [vmem:[#allocation8 + $0x158] sm:$0xff]
    %v895 = vld [vmem:[#allocation8 + $0x160] sm:$0xff]
    %v896 = vld [vmem:[#allocation8 + $0x168] sm:$0xff]
    %v897 = vld [vmem:[#allocation8 + $0x170] sm:$0xff]
    %v898 = vld [vmem:[#allocation8 + $0x178] sm:$0xff]
    %v899 = vld [vmem:[#allocation8 + $0x180] sm:$0xff]
    %v900 = vld [vmem:[#allocation8 + $0x188] sm:$0xff]
    %v901 = vld [vmem:[#allocation8 + $0x190] sm:$0xff]
    %v902 = vld [vmem:[#allocation8 + $0x198] sm:$0xff]
    %v903 = vld [vmem:[#allocation8 + $0x1a0] sm:$0xff]
    %v904 = vld [vmem:[#allocation8 + $0x1a8] sm:$0xff]
    %v905 = vld [vmem:[#allocation8 + $0x1b0] sm:$0xff]
    %v906 = vld [vmem:[#allocation8 + $0x1b8] sm:$0xff]
    %v907 = vld [vmem:[#allocation8 + $0x1c0] sm:$0xff]
    %v908 = vld [vmem:[#allocation8 + $0x1c8] sm:$0xff]
    %v909 = vld [vmem:[#allocation8 + $0x1d0] sm:$0xff]
    %v910 = vld [vmem:[#allocation8 + $0x1d8] sm:$0xff]
    %v911 = vld [vmem:[#allocation8 + $0x1e0] sm:$0xff]
    %v912 = vld [vmem:[#allocation8 + $0x1e8] sm:$0xff]
    %v913 = vld [vmem:[#allocation8 + $0x1f0] sm:$0xff]
    %v914 = vld [vmem:[#allocation8 + $0x1f8] sm:$0xff]
    %v915 = vld [vmem:[#allocation8 + $0x200] sm:$0xff]
    %v916 = vld [vmem:[#allocation8 + $0x208] sm:$0xff]
    %v917 = vld [vmem:[#allocation8 + $0x210] sm:$0xff]
    %v918 = vld [vmem:[#allocation8 + $0x218] sm:$0xff]
    %v919 = vld [vmem:[#allocation8 + $0x220] sm:$0xff]
    %v920 = vld [vmem:[#allocation8 + $0x228] sm:$0xff]
    %v921 = vld [vmem:[#allocation8 + $0x230] sm:$0xff]
    %v922 = vld [vmem:[#allocation8 + $0x238] sm:$0xff]
    %v923 = vld [vmem:[#allocation8 + $0x240] sm:$0xff]
    %v924 = vld [vmem:[#allocation8 + $0x248] sm:$0xff]
    %v925 = vld [vmem:[#allocation8 + $0x250] sm:$0xff]
    %v926 = vld [vmem:[#allocation8 + $0x258] sm:$0xff]
    %v927 = vld [vmem:[#allocation8 + $0x260] sm:$0xff]
    %v928 = vld [vmem:[#allocation8 + $0x268] sm:$0xff]
    %v929 = vld [vmem:[#allocation8 + $0x270] sm:$0xff]
    %v930 = vld [vmem:[#allocation8 + $0x278] sm:$0xff]
    %v931 = vld [vmem:[#allocation8 + $0x280] sm:$0xff]
    %v932 = vld [vmem:[#allocation8 + $0x288] sm:$0xff]
    %v933 = vld [vmem:[#allocation8 + $0x290] sm:$0xff]
    %v934 = vld [vmem:[#allocation8 + $0x298] sm:$0xff]
    %v935 = vld [vmem:[#allocation8 + $0x2a0] sm:$0xff]
    %v936 = vld [vmem:[#allocation8 + $0x2a8] sm:$0xff]
    %v937 = vld [vmem:[#allocation8 + $0x2b0] sm:$0xff]
    %v938 = vld [vmem:[#allocation8 + $0x2b8] sm:$0xff]
    %v939 = vld [vmem:[#allocation8 + $0x2c0] sm:$0xff]
    %v940 = vld [vmem:[#allocation8 + $0x2c8] sm:$0xff]
    %v941 = vld [vmem:[#allocation8 + $0x2d0] sm:$0xff]
    %v942 = vld [vmem:[#allocation8 + $0x2d8] sm:$0xff]
    %v943 = vld [vmem:[#allocation8 + $0x2e0] sm:$0xff]
    %v944 = vld [vmem:[#allocation8 + $0x2e8] sm:$0xff]
    %v945 = vld [vmem:[#allocation8 + $0x2f0] sm:$0xff]
    %v946 = vld [vmem:[#allocation8 + $0x2f8] sm:$0xff]
    %v947 = vld [vmem:[#allocation10] sm:$0x3]
    %v949 = vlaneseq
    %v950 = vshrl.u32 %v949, 7
    %v951 = vsub.s32 0, %v950
    %v952 = vrot.slane %v947, %v951
    %v953 = vlaneseq
    %v954 = vshrl.u32 %v953, 7
    %v955 = vsub.s32 1, %v954
    %v956 = vrot.slane %v947, %v955
    %959 = vmatprep.subr.mxu0 %v852
    %960 = vmatpush1.msra.mxu0 %v851
    %961 = vmatprep.subr.mxu0 %v854
    %962 = vmatpush1.msra.mxu0 %v853
    %963 = vmatprep.subr.mxu0 %v856
    %964 = vmatpush1.msra.mxu0 %v855
    %965 = vmatprep.subr.mxu0 %v858
    %966 = vmatpush1.msra.mxu0 %v857
    %967 = vmatprep.subr.mxu0 %v860
    %968 = vmatpush1.msra.mxu0 %v859
    %969 = vmatprep.subr.mxu0 %v862
    %970 = vmatpush1.msra.mxu0 %v861
    %971 = vmatprep.subr.mxu0 %v864
    %972 = vmatpush1.msra.mxu0 %v863
    %973 = vmatprep.subr.mxu0 %v866
    %974 = vmatpush1.msra.mxu0 %v865
    %975 = vmatprep.subr.mxu0 %v868
    %976 = vmatpush1.msra.mxu0 %v867
    %977 = vmatprep.subr.mxu0 %v870
    %978 = vmatpush1.msra.mxu0 %v869
    %979 = vmatprep.subr.mxu0 %v872
    %980 = vmatpush1.msra.mxu0 %v871
    %981 = vmatprep.subr.mxu0 %v874
    %982 = vmatpush1.msra.mxu0 %v873
    %983 = vmatprep.subr.mxu0 %v876
    %984 = vmatpush1.msra.mxu0 %v875
    %985 = vmatprep.subr.mxu0 %v878
    %986 = vmatpush1.msra.mxu0 %v877
    %987 = vmatprep.subr.mxu0 %v880
    %988 = vmatpush1.msra.mxu0 %v879
    %989 = vmatprep.subr.mxu0 %v882
    %990 = vmatpush1.msra.mxu0 %v881
    %991 = vmatprep.subr.mxu0 %v884
    %992 = vmatpush1.msra.mxu0 %v883
    %993 = vmatprep.subr.mxu0 %v886
    %994 = vmatpush1.msra.mxu0 %v885
    %995 = vmatprep.subr.mxu0 %v888
    %996 = vmatpush1.msra.mxu0 %v887
    %997 = vmatprep.subr.mxu0 %v890
    %998 = vmatpush1.msra.mxu0 %v889
    %999 = vmatprep.subr.mxu0 %v892
    %1000 = vmatpush1.msra.mxu0 %v891
    %1001 = vmatprep.subr.mxu0 %v894
    %1002 = vmatpush1.msra.mxu0 %v893
    %1003 = vmatprep.subr.mxu0 %v896
    %1004 = vmatpush1.msra.mxu0 %v895
    %1005 = vmatprep.subr.mxu0 %v898
    %1006 = vmatpush1.msra.mxu0 %v897
    %1007 = vmatprep.subr.mxu0 %v900
    %1008 = vmatpush1.msra.mxu0 %v899
    %1009 = vmatprep.subr.mxu0 %v902
    %1010 = vmatpush1.msra.mxu0 %v901
    %1011 = vmatprep.subr.mxu0 %v904
    %1012 = vmatpush1.msra.mxu0 %v903
    %1013 = vmatprep.subr.mxu0 %v906
    %1014 = vmatpush1.msra.mxu0 %v905
    %1015 = vmatprep.subr.mxu0 %v908
    %1016 = vmatpush1.msra.mxu0 %v907
    %1017 = vmatprep.subr.mxu0 %v910
    %1018 = vmatpush1.msra.mxu0 %v909
    %1019 = vmatprep.subr.mxu0 %v912
    %1020 = vmatpush1.msra.mxu0 %v911
    %1021 = vmatprep.subr.mxu0 %v914
    %1022 = vmatpush1.msra.mxu0 %v913
    %1023 = vmatprep.mubr.f32.mxu0 %v849
    %1024 = vmatmul.mubr.f32.gmra.mrb[0].mxu0 %v848
    %v1025 = vpop.f32.mrb[0].mxu0
    %v1026 = vadd.f32 %v952, %v1025
    %v1027 = vpop.f32.mrb[0].mxu0
    %v1028 = vadd.f32 %v956, %v1027
    %1029 = vdwg.mxu0
    %1030 = vmatprep.subr.mxu0 %v916
    %1031 = vmatpush1.msra.mxu0 %v915
    %1032 = vmatprep.subr.mxu0 %v918
    %1033 = vmatpush1.msra.mxu0 %v917
    %1034 = vmatprep.subr.mxu0 %v920
    %1035 = vmatpush1.msra.mxu0 %v919
    %1036 = vmatprep.subr.mxu0 %v922
    %1037 = vmatpush1.msra.mxu0 %v921
    %1038 = vmatprep.subr.mxu0 %v924
    %1039 = vmatpush1.msra.mxu0 %v923
    %1040 = vmatprep.subr.mxu0 %v926
    %1041 = vmatpush1.msra.mxu0 %v925
    %1042 = vmatprep.subr.mxu0 %v928
    %1043 = vmatpush1.msra.mxu0 %v927
    %1044 = vmatprep.subr.mxu0 %v930
    %1045 = vmatpush1.msra.mxu0 %v929
    %1046 = vmatprep.subr.mxu0 %v932
    %1047 = vmatpush1.msra.mxu0 %v931
    %1048 = vmatprep.subr.mxu0 %v934
    %1049 = vmatpush1.msra.mxu0 %v933
    %1050 = vmatprep.subr.mxu0 %v936
    %1051 = vmatpush1.msra.mxu0 %v935
    %1052 = vmatprep.subr.mxu0 %v938
    %1053 = vmatpush1.msra.mxu0 %v937
    %1054 = vmatprep.subr.mxu0 %v940
    %1055 = vmatpush1.msra.mxu0 %v939
    %1056 = vmatprep.subr.mxu0 %v942
    %1057 = vmatpush1.msra.mxu0 %v941
    %1058 = vmatprep.subr.mxu0 %v944
    %1059 = vmatpush1.msra.mxu0 %v943
    %1060 = vmatprep.subr.mxu0 %v946
    %1061 = vmatpush1.msra.mxu0 %v945
    %1062 = vmatprep.subr.mxu0 0.0
    %1063 = vmatpush1.msra.mxu0 0.0
    %1064 = vmatprep.subr.mxu0 0.0
    %1065 = vmatpush1.msra.mxu0 0.0
    %1066 = vmatprep.subr.mxu0 0.0
    %1067 = vmatpush1.msra.mxu0 0.0
    %1068 = vmatprep.subr.mxu0 0.0
    %1069 = vmatpush1.msra.mxu0 0.0
    %1070 = vmatprep.subr.mxu0 0.0
    %1071 = vmatpush1.msra.mxu0 0.0
    %1072 = vmatprep.subr.mxu0 0.0
    %1073 = vmatpush1.msra.mxu0 0.0
    %1074 = vmatprep.subr.mxu0 0.0
    %1075 = vmatpush1.msra.mxu0 0.0
    %1076 = vmatprep.subr.mxu0 0.0
    %1077 = vmatpush1.msra.mxu0 0.0
    %1078 = vmatprep.subr.mxu0 0.0
    %1079 = vmatpush1.msra.mxu0 0.0
    %1080 = vmatprep.subr.mxu0 0.0
    %1081 = vmatpush1.msra.mxu0 0.0
    %1082 = vmatprep.subr.mxu0 0.0
    %1083 = vmatpush1.msra.mxu0 0.0
    %1084 = vmatprep.subr.mxu0 0.0
    %1085 = vmatpush1.msra.mxu0 0.0
    %1086 = vmatprep.subr.mxu0 0.0
    %1087 = vmatpush1.msra.mxu0 0.0
    %1088 = vmatprep.subr.mxu0 0.0
    %1089 = vmatpush1.msra.mxu0 0.0
    %1090 = vmatprep.subr.mxu0 0.0
    %1091 = vmatpush1.msra.mxu0 0.0
    %1092 = vmatprep.subr.mxu0 0.0
    %1093 = vmatpush1.msra.mxu0 0.0
    %1094 = vmatprep.mubr.f32.mxu0 0.0
    %1095 = vmatmul.mubr.f32.gmra.mrb[0].mxu0 %v850
    %v1096 = vpop.f32.mrb[0].mxu0
    %v1097 = vadd.f32 %v1026, %v1096
    %v1098 = vpop.f32.mrb[0].mxu0
    %v1099 = vadd.f32 %v1028, %v1098
    %1100 = vdwg.mxu0
    %v1101 = vmax.f32 %v1097, 0.0
    %v1102 = vmax.f32 %v1099, 0.0
    %v1103 = vld [vmem:[#allocation11] sm:$0xff]
    %v1104 = vld [vmem:[#allocation11 + $0x8] sm:$0xff]
    %v1105 = vld [vmem:[#allocation11 + $0x10] sm:$0xff]
    %v1106 = vld [vmem:[#allocation11 + $0x18] sm:$0xff]
    %v1107 = vld [vmem:[#allocation11 + $0x20] sm:$0xff]
    %v1108 = vld [vmem:[#allocation11 + $0x28] sm:$0xff]
    %v1109 = vld [vmem:[#allocation11 + $0x30] sm:$0xff]
    %v1110 = vld [vmem:[#allocation11 + $0x38] sm:$0xff]
    %v1111 = vld [vmem:[#allocation11 + $0x40] sm:$0xff]
    %v1112 = vld [vmem:[#allocation11 + $0x48] sm:$0xff]
    %v1113 = vld [vmem:[#allocation11 + $0x50] sm:$0xff]
    %v1114 = vld [vmem:[#allocation11 + $0x58] sm:$0xff]
    %v1115 = vld [vmem:[#allocation11 + $0x60] sm:$0xff]
    %v1116 = vld [vmem:[#allocation11 + $0x68] sm:$0xff]
    %v1117 = vld [vmem:[#allocation11 + $0x70] sm:$0xff]
    %v1118 = vld [vmem:[#allocation11 + $0x78] sm:$0xff]
    %v1119 = vld [vmem:[#allocation11 + $0x80] sm:$0xff]
    %v1120 = vld [vmem:[#allocation11 + $0x88] sm:$0xff]
    %v1121 = vld [vmem:[#allocation11 + $0x90] sm:$0xff]
    %v1122 = vld [vmem:[#allocation11 + $0x98] sm:$0xff]
    %v1123 = vld [vmem:[#allocation11 + $0xa0] sm:$0xff]
    %v1124 = vld [vmem:[#allocation11 + $0xa8] sm:$0xff]
    %v1125 = vld [vmem:[#allocation11 + $0xb0] sm:$0xff]
    %v1126 = vld [vmem:[#allocation11 + $0xb8] sm:$0xff]
    %v1127 = vld [vmem:[#allocation11 + $0xc0] sm:$0xff]
    %v1128 = vld [vmem:[#allocation11 + $0xc8] sm:$0xff]
    %v1129 = vld [vmem:[#allocation11 + $0xd0] sm:$0xff]
    %v1130 = vld [vmem:[#allocation11 + $0xd8] sm:$0xff]
    %v1131 = vld [vmem:[#allocation11 + $0xe0] sm:$0xff]
    %v1132 = vld [vmem:[#allocation11 + $0xe8] sm:$0xff]
    %v1133 = vld [vmem:[#allocation11 + $0xf0] sm:$0xff]
    %v1134 = vld [vmem:[#allocation11 + $0xf8] sm:$0xff]
    %v1135 = vld [vmem:[#allocation13] sm:$0x1]
    %v1137 = vlaneseq
    %v1138 = vshrl.u32 %v1137, 7
    %v1139 = vsub.s32 0, %v1138
    %v1140 = vrot.slane %v1135, %v1139
    %1142 = vmatprep.subr.mxu0 0.0
    %1143 = vmatpush1.msra.mxu0 %v1103
    %1144 = vmatprep.subr.mxu0 0.0
    %1145 = vmatpush1.msra.mxu0 %v1104
    %1146 = vmatprep.subr.mxu0 0.0
    %1147 = vmatpush1.msra.mxu0 %v1105
    %1148 = vmatprep.subr.mxu0 0.0
    %1149 = vmatpush1.msra.mxu0 %v1106
    %1150 = vmatprep.subr.mxu0 0.0
    %1151 = vmatpush1.msra.mxu0 %v1107
    %1152 = vmatprep.subr.mxu0 0.0
    %1153 = vmatpush1.msra.mxu0 %v1108
    %1154 = vmatprep.subr.mxu0 0.0
    %1155 = vmatpush1.msra.mxu0 %v1109
    %1156 = vmatprep.subr.mxu0 0.0
    %1157 = vmatpush1.msra.mxu0 %v1110
    %1158 = vmatprep.subr.mxu0 0.0
    %1159 = vmatpush1.msra.mxu0 %v1111
    %1160 = vmatprep.subr.mxu0 0.0
    %1161 = vmatpush1.msra.mxu0 %v1112
    %1162 = vmatprep.subr.mxu0 0.0
    %1163 = vmatpush1.msra.mxu0 %v1113
    %1164 = vmatprep.subr.mxu0 0.0
    %1165 = vmatpush1.msra.mxu0 %v1114
    %1166 = vmatprep.subr.mxu0 0.0
    %1167 = vmatpush1.msra.mxu0 %v1115
    %1168 = vmatprep.subr.mxu0 0.0
    %1169 = vmatpush1.msra.mxu0 %v1116
    %1170 = vmatprep.subr.mxu0 0.0
    %1171 = vmatpush1.msra.mxu0 %v1117
    %1172 = vmatprep.subr.mxu0 0.0
    %1173 = vmatpush1.msra.mxu0 %v1118
    %1174 = vmatprep.subr.mxu0 0.0
    %1175 = vmatpush1.msra.mxu0 %v1119
    %1176 = vmatprep.subr.mxu0 0.0
    %1177 = vmatpush1.msra.mxu0 %v1120
    %1178 = vmatprep.subr.mxu0 0.0
    %1179 = vmatpush1.msra.mxu0 %v1121
    %1180 = vmatprep.subr.mxu0 0.0
    %1181 = vmatpush1.msra.mxu0 %v1122
    %1182 = vmatprep.subr.mxu0 0.0
    %1183 = vmatpush1.msra.mxu0 %v1123
    %1184 = vmatprep.subr.mxu0 0.0
    %1185 = vmatpush1.msra.mxu0 %v1124
    %1186 = vmatprep.subr.mxu0 0.0
    %1187 = vmatpush1.msra.mxu0 %v1125
    %1188 = vmatprep.subr.mxu0 0.0
    %1189 = vmatpush1.msra.mxu0 %v1126
    %1190 = vmatprep.subr.mxu0 0.0
    %1191 = vmatpush1.msra.mxu0 %v1127
    %1192 = vmatprep.subr.mxu0 0.0
    %1193 = vmatpush1.msra.mxu0 %v1128
    %1194 = vmatprep.subr.mxu0 0.0
    %1195 = vmatpush1.msra.mxu0 %v1129
    %1196 = vmatprep.subr.mxu0 0.0
    %1197 = vmatpush1.msra.mxu0 %v1130
    %1198 = vmatprep.subr.mxu0 0.0
    %1199 = vmatpush1.msra.mxu0 %v1131
    %1200 = vmatprep.subr.mxu0 0.0
    %1201 = vmatpush1.msra.mxu0 %v1132
    %1202 = vmatprep.subr.mxu0 0.0
    %1203 = vmatpush1.msra.mxu0 %v1133
    %1204 = vmatprep.subr.mxu0 0.0
    %1205 = vmatpush1.msra.mxu0 %v1134
    %1206 = vmatprep.mubr.f32.mxu0 %v1102
    %1207 = vmatmul.mubr.f32.gmra.mrb[0].mxu0 %v1101
    %v1208 = vpop.f32.mrb[0].mxu0
    %v1209 = vadd.f32 %v1140, %v1208
    %v1210 = vpop.f32.mrb[0].mxu0
    %1211 = vdwg.mxu0
    %1212 = vst [vmem:[#allocation14] sm:$0xff] %v1209
    // Predicated region
    $region58: #{tpu_custom_call.1} parent=1 // pred_check
      _
    $region59: #{tpu_custom_call.1} parent=1 // pred_check_branch
      %1214 = sbr.rel (0) target = $region61
    $region60: #{tpu_custom_call.1} parent=1 // pred_region
      %s1216 = ssub.s32 128, 128
      %1217 = vsyncadd [#allocation4], %s1216
      %s1219 = sshll.u32 [#allocation14], 4
      %s1220 = int_to_ptr.vmem [resolvable:$true] %s1219
      %1222 = dma.vmem_to_hbm [thread:$0]  %s1220, 128, %s7, [#allocation4]
    $region61: #{tpu_custom_call.1} parent=1 // pred_fallthru
      _
    // Predicated region
    $region62: #{tpu_custom_call.1} parent=1 // pred_check
      _
    $region63: #{tpu_custom_call.1} parent=1 // pred_check_branch
      %1224 = sbr.rel (0) target = $region65
    $region64: #{tpu_custom_call.1} parent=1 // pred_region
      %1225 = dma.done [#allocation4], 128
    $region65: #{tpu_custom_call.1} parent=1 // pred_fallthru
      _
    %1226 = vsyncpa [#allocation3], 1
    %1227 = vsyncpa [#allocation6], 1
    %1228 = vsyncpa [#allocation9], 1
    %1229 = vsyncpa [#allocation12], 1
    %1230 = vsyncpa [#allocation4], 1

</llo_original>
